<compile_context>
chip_gen: v7x
topology: tpu7x:2x2x1
jax: 0.10.0
libtpu: 0.0.40
codegen_flags: <defaults>
</compile_context>

<pallas_src>
import jax
import jax.numpy as jnp
from jax.experimental import pallas as pl
from jax.experimental.pallas import tpu as pltpu


def _round_up(x, m):
    return ((x + m - 1) // m) * m


def dnn5_kernel(x_ref,
                w1_ref, b1_ref,
                w2_ref, b2_ref,
                w3_ref, b3_ref,
                w4_ref, b4_ref,
                w5_ref, b5_ref,
                o_ref):
    """Fused forward pass for one (TB, F) batch tile; weights are VMEM-resident."""

    def layer(h, w_ref, b_ref, relu):
        # MXU matmul in the weight dtype (bf16) with f32 accumulation.
        y = jnp.dot(h.astype(w_ref.dtype), w_ref[...],
                    preferred_element_type=jnp.float32)
        y = y + b_ref[...]          # bias add in f32
        if relu:
            y = jnp.maximum(y, 0.0)
        return y

    h = x_ref[...]
    h = layer(h, w1_ref, b1_ref, relu=True)    # in  -> 512
    h = layer(h, w2_ref, b2_ref, relu=True)    # 512 -> 256
    h = layer(h, w3_ref, b3_ref, relu=True)    # 256 -> 128
    h = layer(h, w4_ref, b4_ref, relu=True)    # 128 -> 64
    h = layer(h, w5_ref, b5_ref, relu=False)   # 64  -> out_pad (lane-dense)
    o_ref[...] = h.astype(o_ref.dtype)


def dnn5_forward(x, params, *, block_b=128, compute_dtype=jnp.bfloat16):
    """params = [(w1, b1), ..., (w5, b5)]; w_i is (in, out), b_i is (1, out) f32."""
    B, F = x.shape
    out_dim = params[-1][0].shape[1]

    # Lane-dense padded output width (avoid masked partial stores on 8-wide out).
    out_pad = max(128, _round_up(out_dim, 128))

    # Batch tile: multiple of 8 (f32 sublanes), capped at block_b.
    TB = min(block_b, _round_up(B, 8))
    Bp = _round_up(B, TB)

    # Prepare operands: bf16 activations/weights, f32 biases, zero-padded tail layer.
    x_p = x
    if Bp != B:
        x_p = jnp.pad(x_p, ((0, Bp - B), (0, 0)))
    x_p = x_p.astype(compute_dtype)

    flat = []
    for li, (w, b) in enumerate(params):
        if li == len(params) - 1 and out_pad != out_dim:
            w = jnp.pad(w, ((0, 0), (0, out_pad - out_dim)))
            b = jnp.pad(b, ((0, 0), (0, out_pad - out_dim)))
        flat.extend([w.astype(compute_dtype), b.astype(jnp.float32)])

    # BlockSpecs: x/out tiled over the batch; weights/biases constant (resident).
    in_specs = [pl.BlockSpec((TB, F), lambda i: (i, 0))]
    for a in flat:
        in_specs.append(pl.BlockSpec(a.shape, lambda i: (0, 0)))
    out_specs = pl.BlockSpec((TB, out_pad), lambda i: (i, 0))

    grid = (Bp // TB,)

    # Scheduler hint: MXU-bound once weights are resident.
    dims = [F, 512, 256, 128, 64, out_pad]
    flops = 2 * Bp * sum(dims[i] * dims[i + 1] for i in range(5))
    bytes_accessed = (x_p.size * x_p.dtype.itemsize
                      + sum(a.size * a.dtype.itemsize for a in flat)
                      + Bp * out_pad * 4)
    cost = pl.CostEstimate(flops=flops, transcendentals=0,
                           bytes_accessed=bytes_accessed)

    out_padded = pl.pallas_call(
        dnn5_kernel,
        out_shape=jax.ShapeDtypeStruct((Bp, out_pad), jnp.float32),
        grid_spec=pltpu.PrefetchScalarGridSpec(
            num_scalar_prefetch=0,
            grid=grid,
            in_specs=in_specs,
            out_specs=out_specs,
        ),
        compiler_params=pltpu.CompilerParams(
            dimension_semantics=("parallel",),
        ),
        cost_estimate=cost,
    )(x_p, *flat)

    return out_padded[:B, :out_dim]


def init_dnn5_params(key, inputsize, outputsize):
    """Deterministic synthetic params matching nn.Linear shapes (stored as (in, out))."""
    dims = [inputsize, 512, 256, 128, 64, outputsize]
    params = []
    for i in range(5):
        fan_in, fan_out = dims[i], dims[i + 1]
        key, kw, kb = jax.random.split(key, 3)
        bound = 1.0 / (fan_in ** 0.5)  # same scale as PyTorch default init
        w = jax.random.uniform(kw, (fan_in, fan_out), jnp.float32, -bound, bound)
        b = jax.random.uniform(kb, (1, fan_out), jnp.float32, -bound, bound)
        params.append((w, b))
    return params


def dnn5_reference(x, params, compute_dtype=jnp.bfloat16):
    """Plain-JAX reference mirroring the kernel's precision path."""
    h = x
    for i, (w, b) in enumerate(params):
        h = jnp.dot(h.astype(compute_dtype), w.astype(compute_dtype),
                    preferred_element_type=jnp.float32) + b
        if i < len(params) - 1:
            h = jnp.maximum(h, 0.0)
    return h


if __name__ == "__main__":
    key = jax.random.PRNGKey(0)
    k_in, k_par = jax.random.split(key)

    batch = 256          # two 128-row grid steps (exercises the batch pipeline)
    inputsize = 32
    outputsize = 8

    x = jax.random.normal(k_in, (batch, inputsize), dtype=jnp.float32)
    params = init_dnn5_params(k_par, inputsize, outputsize)

    out = dnn5_forward(x, params, block_b=128)
    out = jax.block_until_ready(out)

    ref = dnn5_reference(x, params)
    assert out.shape == (batch, outputsize)
    assert jnp.allclose(out, ref, atol=1e-2, rtol=1e-2), \
        float(jnp.max(jnp.abs(out - ref)))

    print("KERNEL_OK")
</pallas_src>

<mosaic_0001>
module attributes {stable_mosaic.version = 11 : i64} {
  func.func @dnn5_kernel(%arg0: i32, %arg1: memref<128x32xbf16, #tpu.memory_space<vmem>>, %arg2: memref<32x512xbf16, #tpu.memory_space<vmem>>, %arg3: memref<1x512xf32, #tpu.memory_space<vmem>>, %arg4: memref<512x256xbf16, #tpu.memory_space<vmem>>, %arg5: memref<1x256xf32, #tpu.memory_space<vmem>>, %arg6: memref<256x128xbf16, #tpu.memory_space<vmem>>, %arg7: memref<1x128xf32, #tpu.memory_space<vmem>>, %arg8: memref<128x64xbf16, #tpu.memory_space<vmem>>, %arg9: memref<1x64xf32, #tpu.memory_space<vmem>>, %arg10: memref<64x128xbf16, #tpu.memory_space<vmem>>, %arg11: memref<1x128xf32, #tpu.memory_space<vmem>>, %arg12: memref<128x128xf32, #tpu.memory_space<vmem>>) attributes {dimension_semantics = [#tpu.dimension_semantics<parallel>], iteration_bounds = array<i64: 2>, scalar_prefetch = 0 : i64, scratch_operands = 0 : i64, tpu.core_type = #tpu.core_type<tc>, window_params = [{transform_indices = @transform_0, window_bounds = array<i64: 128, 32>}, {pipeline_mode = #tpu.pipeline_mode<synchronous>, transform_indices = @transform_1, window_bounds = array<i64: 32, 512>}, {pipeline_mode = #tpu.pipeline_mode<synchronous>, transform_indices = @transform_2, window_bounds = array<i64: 1, 512>}, {pipeline_mode = #tpu.pipeline_mode<synchronous>, transform_indices = @transform_3, window_bounds = array<i64: 512, 256>}, {pipeline_mode = #tpu.pipeline_mode<synchronous>, transform_indices = @transform_4, window_bounds = array<i64: 1, 256>}, {pipeline_mode = #tpu.pipeline_mode<synchronous>, transform_indices = @transform_5, window_bounds = array<i64: 256, 128>}, {pipeline_mode = #tpu.pipeline_mode<synchronous>, transform_indices = @transform_6, window_bounds = array<i64: 1, 128>}, {pipeline_mode = #tpu.pipeline_mode<synchronous>, transform_indices = @transform_7, window_bounds = array<i64: 128, 64>}, {pipeline_mode = #tpu.pipeline_mode<synchronous>, transform_indices = @transform_8, window_bounds = array<i64: 1, 64>}, {pipeline_mode = #tpu.pipeline_mode<synchronous>, transform_indices = @transform_9, window_bounds = array<i64: 64, 128>}, {pipeline_mode = #tpu.pipeline_mode<synchronous>, transform_indices = @transform_10, window_bounds = array<i64: 1, 128>}, {transform_indices = @transform_11, window_bounds = array<i64: 128, 128>}]} {
    %c0 = arith.constant 0 : index
    %c0_0 = arith.constant 0 : index
    %0 = vector.load %arg1[%c0, %c0_0] : memref<128x32xbf16, #tpu.memory_space<vmem>>, vector<128x32xbf16>
    %c0_1 = arith.constant 0 : index
    %c0_2 = arith.constant 0 : index
    %1 = vector.load %arg2[%c0_1, %c0_2] : memref<32x512xbf16, #tpu.memory_space<vmem>>, vector<32x512xbf16>
    %cst = arith.constant dense<0.000000e+00> : vector<128x512xf32>
    %2 = tpu.matmul %0, %1, %cst {dimension_numbers = #tpu.dot_dimension_numbers<[1], [0], [0], [1], [0, 0, 1, 1], [], []>} : vector<128x32xbf16>, vector<32x512xbf16>, vector<128x512xf32> -> vector<128x512xf32>
    %c0_3 = arith.constant 0 : index
    %c0_4 = arith.constant 0 : index
    %3 = vector.load %arg3[%c0_3, %c0_4] : memref<1x512xf32, #tpu.memory_space<vmem>>, vector<1x512xf32>
    %4 = vector.broadcast %3 : vector<1x512xf32> to vector<128x512xf32>
    %5 = arith.addf %2, %4 : vector<128x512xf32>
    %cst_5 = arith.constant 0.000000e+00 : f32
    %6 = vector.broadcast %cst_5 : f32 to vector<128x512xf32>
    %7 = arith.maximumf %5, %6 : vector<128x512xf32>
    %8 = arith.truncf %7 : vector<128x512xf32> to vector<128x512xbf16>
    %c0_6 = arith.constant 0 : index
    %c0_7 = arith.constant 0 : index
    %9 = vector.load %arg4[%c0_6, %c0_7] : memref<512x256xbf16, #tpu.memory_space<vmem>>, vector<512x256xbf16>
    %cst_8 = arith.constant dense<0.000000e+00> : vector<128x256xf32>
    %10 = tpu.matmul %8, %9, %cst_8 {dimension_numbers = #tpu.dot_dimension_numbers<[1], [0], [0], [1], [0, 0, 1, 1], [], []>} : vector<128x512xbf16>, vector<512x256xbf16>, vector<128x256xf32> -> vector<128x256xf32>
    %c0_9 = arith.constant 0 : index
    %c0_10 = arith.constant 0 : index
    %11 = vector.load %arg5[%c0_9, %c0_10] : memref<1x256xf32, #tpu.memory_space<vmem>>, vector<1x256xf32>
    %12 = vector.broadcast %11 : vector<1x256xf32> to vector<128x256xf32>
    %13 = arith.addf %10, %12 : vector<128x256xf32>
    %cst_11 = arith.constant 0.000000e+00 : f32
    %14 = vector.broadcast %cst_11 : f32 to vector<128x256xf32>
    %15 = arith.maximumf %13, %14 : vector<128x256xf32>
    %16 = arith.truncf %15 : vector<128x256xf32> to vector<128x256xbf16>
    %c0_12 = arith.constant 0 : index
    %c0_13 = arith.constant 0 : index
    %17 = vector.load %arg6[%c0_12, %c0_13] : memref<256x128xbf16, #tpu.memory_space<vmem>>, vector<256x128xbf16>
    %cst_14 = arith.constant dense<0.000000e+00> : vector<128x128xf32>
    %18 = tpu.matmul %16, %17, %cst_14 {dimension_numbers = #tpu.dot_dimension_numbers<[1], [0], [0], [1], [0, 0, 1, 1], [], []>} : vector<128x256xbf16>, vector<256x128xbf16>, vector<128x128xf32> -> vector<128x128xf32>
    %c0_15 = arith.constant 0 : index
    %c0_16 = arith.constant 0 : index
    %19 = vector.load %arg7[%c0_15, %c0_16] : memref<1x128xf32, #tpu.memory_space<vmem>>, vector<1x128xf32>
    %20 = vector.broadcast %19 : vector<1x128xf32> to vector<128x128xf32>
    %21 = arith.addf %18, %20 : vector<128x128xf32>
    %cst_17 = arith.constant 0.000000e+00 : f32
    %22 = vector.broadcast %cst_17 : f32 to vector<128x128xf32>
    %23 = arith.maximumf %21, %22 : vector<128x128xf32>
    %24 = arith.truncf %23 : vector<128x128xf32> to vector<128x128xbf16>
    %c0_18 = arith.constant 0 : index
    %c0_19 = arith.constant 0 : index
    %25 = vector.load %arg8[%c0_18, %c0_19] : memref<128x64xbf16, #tpu.memory_space<vmem>>, vector<128x64xbf16>
    %cst_20 = arith.constant dense<0.000000e+00> : vector<128x64xf32>
    %26 = tpu.matmul %24, %25, %cst_20 {dimension_numbers = #tpu.dot_dimension_numbers<[1], [0], [0], [1], [0, 0, 1, 1], [], []>} : vector<128x128xbf16>, vector<128x64xbf16>, vector<128x64xf32> -> vector<128x64xf32>
    %c0_21 = arith.constant 0 : index
    %c0_22 = arith.constant 0 : index
    %27 = vector.load %arg9[%c0_21, %c0_22] : memref<1x64xf32, #tpu.memory_space<vmem>>, vector<1x64xf32>
    %28 = vector.broadcast %27 : vector<1x64xf32> to vector<128x64xf32>
    %29 = arith.addf %26, %28 : vector<128x64xf32>
    %cst_23 = arith.constant 0.000000e+00 : f32
    %30 = vector.broadcast %cst_23 : f32 to vector<128x64xf32>
    %31 = arith.maximumf %29, %30 : vector<128x64xf32>
    %32 = arith.truncf %31 : vector<128x64xf32> to vector<128x64xbf16>
    %c0_24 = arith.constant 0 : index
    %c0_25 = arith.constant 0 : index
    %33 = vector.load %arg10[%c0_24, %c0_25] : memref<64x128xbf16, #tpu.memory_space<vmem>>, vector<64x128xbf16>
    %cst_26 = arith.constant dense<0.000000e+00> : vector<128x128xf32>
    %34 = tpu.matmul %32, %33, %cst_26 {dimension_numbers = #tpu.dot_dimension_numbers<[1], [0], [0], [1], [0, 0, 1, 1], [], []>} : vector<128x64xbf16>, vector<64x128xbf16>, vector<128x128xf32> -> vector<128x128xf32>
    %c0_27 = arith.constant 0 : index
    %c0_28 = arith.constant 0 : index
    %35 = vector.load %arg11[%c0_27, %c0_28] : memref<1x128xf32, #tpu.memory_space<vmem>>, vector<1x128xf32>
    %36 = vector.broadcast %35 : vector<1x128xf32> to vector<128x128xf32>
    %37 = arith.addf %34, %36 : vector<128x128xf32>
    %c0_29 = arith.constant 0 : index
    %c0_30 = arith.constant 0 : index
    %38 = vector.load %arg12[%c0_29, %c0_30] : memref<128x128xf32, #tpu.memory_space<vmem>>, vector<128x128xf32>
    tpu.vector_store %arg12[%c0_29, %c0_30], %37 {strides = array<i32>} : memref<128x128xf32, #tpu.memory_space<vmem>>, vector<128x128xf32>,
    return
  }
  func.func @transform_0(%arg0: i32) -> (i32, i32) {
    %c0_i32 = arith.constant 0 : i32
    %c0_i32_0 = arith.constant 0 : i32
    return %arg0, %c0_i32 : i32, i32
  }
  func.func @transform_1(%arg0: i32) -> (i32, i32) {
    %c0_i32 = arith.constant 0 : i32
    %c0_i32_0 = arith.constant 0 : i32
    %c0_i32_1 = arith.constant 0 : i32
    return %c0_i32, %c0_i32_0 : i32, i32
  }
  func.func @transform_2(%arg0: i32) -> (i32, i32) {
    %c0_i32 = arith.constant 0 : i32
    %c0_i32_0 = arith.constant 0 : i32
    %c0_i32_1 = arith.constant 0 : i32
    return %c0_i32, %c0_i32_0 : i32, i32
  }
  func.func @transform_3(%arg0: i32) -> (i32, i32) {
    %c0_i32 = arith.constant 0 : i32
    %c0_i32_0 = arith.constant 0 : i32
    %c0_i32_1 = arith.constant 0 : i32
    return %c0_i32, %c0_i32_0 : i32, i32
  }
  func.func @transform_4(%arg0: i32) -> (i32, i32) {
    %c0_i32 = arith.constant 0 : i32
    %c0_i32_0 = arith.constant 0 : i32
    %c0_i32_1 = arith.constant 0 : i32
    return %c0_i32, %c0_i32_0 : i32, i32
  }
  func.func @transform_5(%arg0: i32) -> (i32, i32) {
    %c0_i32 = arith.constant 0 : i32
    %c0_i32_0 = arith.constant 0 : i32
    %c0_i32_1 = arith.constant 0 : i32
    return %c0_i32, %c0_i32_0 : i32, i32
  }
  func.func @transform_6(%arg0: i32) -> (i32, i32) {
    %c0_i32 = arith.constant 0 : i32
    %c0_i32_0 = arith.constant 0 : i32
    %c0_i32_1 = arith.constant 0 : i32
    return %c0_i32, %c0_i32_0 : i32, i32
  }
  func.func @transform_7(%arg0: i32) -> (i32, i32) {
    %c0_i32 = arith.constant 0 : i32
    %c0_i32_0 = arith.constant 0 : i32
    %c0_i32_1 = arith.constant 0 : i32
    return %c0_i32, %c0_i32_0 : i32, i32
  }
  func.func @transform_8(%arg0: i32) -> (i32, i32) {
    %c0_i32 = arith.constant 0 : i32
    %c0_i32_0 = arith.constant 0 : i32
    %c0_i32_1 = arith.constant 0 : i32
    return %c0_i32, %c0_i32_0 : i32, i32
  }
  func.func @transform_9(%arg0: i32) -> (i32, i32) {
    %c0_i32 = arith.constant 0 : i32
    %c0_i32_0 = arith.constant 0 : i32
    %c0_i32_1 = arith.constant 0 : i32
    return %c0_i32, %c0_i32_0 : i32, i32
  }
  func.func @transform_10(%arg0: i32) -> (i32, i32) {
    %c0_i32 = arith.constant 0 : i32
    %c0_i32_0 = arith.constant 0 : i32
    %c0_i32_1 = arith.constant 0 : i32
    return %c0_i32, %c0_i32_0 : i32, i32
  }
  func.func @transform_11(%arg0: i32) -> (i32, i32) {
    %c0_i32 = arith.constant 0 : i32
    %c0_i32_0 = arith.constant 0 : i32
    return %arg0, %c0_i32 : i32, i32
  }
}

</mosaic_0001>

<llo_original>
// kernel: tpu_custom_call.1
$region0: #{tpu_custom_call.1}
  #allocation0 [shape = 'u32[]', space=smem, size = 0x4, offset = 0x4, fixed_abs, tag = 'smem constant byte address 0x4 - core index']
  #allocation1 [shape = 'u32[144,128]{1,0:T(1,128)}', space=vmem, size = 0x12000, scoped, tag = 'internal scratch']
  %s0 = inlined_call_operand.vmem [shape: bf16[256,32], index: 0, kind: input, shape index: {}]
  %s1 = inlined_call_operand.vmem [shape: bf16[32,512], index: 1, kind: input, shape index: {}]
  %s2 = inlined_call_operand.vmem [shape: f32[1,512], index: 2, kind: input, shape index: {}]
  %s3 = inlined_call_operand.hbm [shape: bf16[512,256], index: 3, kind: input, shape index: {}]
  %s4 = inlined_call_operand.vmem [shape: f32[1,256], index: 4, kind: input, shape index: {}]
  %s5 = inlined_call_operand.vmem [shape: bf16[256,128], index: 5, kind: input, shape index: {}]
  %s6 = inlined_call_operand.vmem [shape: f32[1,128], index: 6, kind: input, shape index: {}]
  %s7 = inlined_call_operand.vmem [shape: bf16[128,64], index: 7, kind: input, shape index: {}]
  %s8 = inlined_call_operand.vmem [shape: f32[1,64], index: 8, kind: input, shape index: {}]
  %s9 = inlined_call_operand.vmem [shape: bf16[64,128], index: 9, kind: input, shape index: {}]
  %s10 = inlined_call_operand.vmem [shape: f32[1,128], index: 10, kind: input, shape index: {}]
  %s11 = inlined_call_operand.hbm [shape: f32[256,128], index: 11, kind: output, shape index: {}]
  %s12 = sld [smem:[#allocation0]]
  $region81: #{tpu_custom_call.1} parent=0
    _
  %s14 = ssub.s32 1, %s12
  %s15 = scalar_select 0, %s14, %s12
  $region1: #{tpu_custom_call.1} parent=0
    #allocation2 [shape = 'u8[262144]{0}', space=vmem, size = 0x40000, scoped, tag = 'input window, operand 3, single buffered']
    #allocation3 [shape = 's32[2]{0}', space=sflag, size = 0x8, scoped, tag = 'scoped memory for tpu_custom_call.1']
    #allocation4 [shape = 's32[2]{0}', space=sflag, size = 0x8, scoped, tag = 'scoped memory for tpu_custom_call.1']
    #allocation5 [shape = 'u8[131072]{0}', space=vmem, size = 0x20000, scoped, tag = 'output window, operand 0']
    %16 = vsyncpa [#allocation3], 0
    %17 = vsyncpa [#allocation4], 0
    %s18 = scalar_lea.sflag [#allocation4], 1
    %19 = vsyncpa %s18, 0
    loop: start=0, step=1, limit=4
    $region2: #{tpu_custom_call.1} parent=1 // loop_pre_header
      _
    $region3: #{tpu_custom_call.1} parent=1 // loop_header
      %s21 = sphi 0, %s25
      %p22 = scmp.ge.s32.totalorder %s21, 4
      %s31 = sphi 0, %s33
      %s34 = sphi 0, %s31
      %s35 = sphi 0, %s34
      %s51 = sphi 0, %s35
      %s55 = sphi 0, %s55
      %s57 = sphi 0, %s55
      %s58 = sphi 0, %s57
      %s72 = sphi 0, %s58
      %s76 = sphi 0, %s76
      %s78 = sphi 0, %s76
      %s79 = sphi 0, %s78
      %s93 = sphi 0, %s79
      %s97 = sphi 0, %s97
      %s99 = sphi 0, %s97
      %s100 = sphi 0, %s99
      %s114 = sphi 0, %s100
      %s118 = sphi 0, %s118
      %s120 = sphi 0, %s118
      %s121 = sphi 0, %s120
      %s135 = sphi 0, %s121
      %s139 = sphi 0, %s139
      %s141 = sphi 0, %s139
      %s142 = sphi 0, %s141
      %s156 = sphi 0, %s142
      %s160 = sphi 0, %s160
      %s162 = sphi 0, %s160
      %s163 = sphi 0, %s162
      %s177 = sphi 0, %s163
      %s181 = sphi 0, %s181
      %s183 = sphi 0, %s181
      %s184 = sphi 0, %s183
      %s198 = sphi 0, %s184
      %s202 = sphi 0, %s202
      %s204 = sphi 0, %s202
      %s205 = sphi 0, %s204
      %s219 = sphi 0, %s205
      %s223 = sphi 0, %s223
      %s225 = sphi 0, %s223
      %s226 = sphi 0, %s225
      %s240 = sphi 0, %s226
      %s244 = sphi 0, %s244
      %s246 = sphi 0, %s244
      %s247 = sphi 0, %s246
      %s261 = sphi 0, %s247
      %s267 = sphi 0, %s269
      %s270 = sphi 0, %s267
      %s271 = sphi 0, %s270
      %s287 = sphi 0, %s271
    $region4: #{tpu_custom_call.1} parent=1 // loop_header_branch
      %24 = sbr.rel (%p22) target = $region8
    $region5: #{tpu_custom_call.1} parent=1 // loop_body
      %s26 = ssub.s32 %s21, 1
      %s27 = ssub.s32 %s21, 2
      %s28 = sadd.s32 %s21, 1
      %s29 = ssub.s32 %s21, %s28
      %p30 = scmp.eq.s32.totalorder %s29, 0
      %s32 = sadd.s32 %s31, 1
      %s33 = scalar_select %p30, %s31, %s32
      %p36 = pneg %p30
      %p37 = scmp.eq.s32.totalorder %s21, 1
      %p38 = por %p36, %p37
      %p39 = scmp.ne.s32.totalorder %s31, %s34
      %p40 = scmp.eq.s32.totalorder %s21, 0
      %p41 = por %p39, %p40
      %p42 = scmp.ne.s32.totalorder %s31, %s34
      %p43 = scmp.eq.s32.totalorder %s26, 1
      %p44 = por %p42, %p43
      %p45 = scmp.ne.s32.totalorder %s34, %s35
      %p46 = scmp.eq.s32.totalorder %s26, 0
      %p47 = por %p45, %p46
      %p48 = scmp.ne.s32.totalorder %s34, %s35
      %p49 = scmp.eq.s32.totalorder %s27, 1
      %p50 = por %p48, %p49
      %p52 = scmp.ne.s32.totalorder %s35, %s51
      %p53 = scmp.eq.s32.totalorder %s27, 0
      %p54 = por %p52, %p53
      %s56 = sadd.s32 %s55, 1
      %p59 = scmp.eq.s32.totalorder %s21, 1
      %p60 = scmp.ne.s32.totalorder %s55, %s57
      %p61 = scmp.eq.s32.totalorder %s21, 0
      %p62 = por %p60, %p61
      %p63 = scmp.ne.s32.totalorder %s55, %s57
      %p64 = scmp.eq.s32.totalorder %s26, 1
      %p65 = por %p63, %p64
      %p66 = scmp.ne.s32.totalorder %s57, %s58
      %p67 = scmp.eq.s32.totalorder %s26, 0
      %p68 = por %p66, %p67
      %p69 = scmp.ne.s32.totalorder %s57, %s58
      %p70 = scmp.eq.s32.totalorder %s27, 1
      %p71 = por %p69, %p70
      %p73 = scmp.ne.s32.totalorder %s58, %s72
      %p74 = scmp.eq.s32.totalorder %s27, 0
      %p75 = por %p73, %p74
      %s77 = sadd.s32 %s76, 1
      %p80 = scmp.eq.s32.totalorder %s21, 1
      %p81 = scmp.ne.s32.totalorder %s76, %s78
      %p82 = scmp.eq.s32.totalorder %s21, 0
      %p83 = por %p81, %p82
      %p84 = scmp.ne.s32.totalorder %s76, %s78
      %p85 = scmp.eq.s32.totalorder %s26, 1
      %p86 = por %p84, %p85
      %p87 = scmp.ne.s32.totalorder %s78, %s79
      %p88 = scmp.eq.s32.totalorder %s26, 0
      %p89 = por %p87, %p88
      %p90 = scmp.ne.s32.totalorder %s78, %s79
      %p91 = scmp.eq.s32.totalorder %s27, 1
      %p92 = por %p90, %p91
      %p94 = scmp.ne.s32.totalorder %s79, %s93
      %p95 = scmp.eq.s32.totalorder %s27, 0
      %p96 = por %p94, %p95
      %s98 = sadd.s32 %s97, 1
      %p101 = scmp.eq.s32.totalorder %s21, 1
      %p102 = scmp.ne.s32.totalorder %s97, %s99
      %p103 = scmp.eq.s32.totalorder %s21, 0
      %p104 = por %p102, %p103
      %p105 = scmp.ne.s32.totalorder %s97, %s99
      %p106 = scmp.eq.s32.totalorder %s26, 1
      %p107 = por %p105, %p106
      %p108 = scmp.ne.s32.totalorder %s99, %s100
      %p109 = scmp.eq.s32.totalorder %s26, 0
      %p110 = por %p108, %p109
      %p111 = scmp.ne.s32.totalorder %s99, %s100
      %p112 = scmp.eq.s32.totalorder %s27, 1
      %p113 = por %p111, %p112
      %p115 = scmp.ne.s32.totalorder %s100, %s114
      %p116 = scmp.eq.s32.totalorder %s27, 0
      %p117 = por %p115, %p116
      %s119 = sadd.s32 %s118, 1
      %p122 = scmp.eq.s32.totalorder %s21, 1
      %p123 = scmp.ne.s32.totalorder %s118, %s120
      %p124 = scmp.eq.s32.totalorder %s21, 0
      %p125 = por %p123, %p124
      %p126 = scmp.ne.s32.totalorder %s118, %s120
      %p127 = scmp.eq.s32.totalorder %s26, 1
      %p128 = por %p126, %p127
      %p129 = scmp.ne.s32.totalorder %s120, %s121
      %p130 = scmp.eq.s32.totalorder %s26, 0
      %p131 = por %p129, %p130
      %p132 = scmp.ne.s32.totalorder %s120, %s121
      %p133 = scmp.eq.s32.totalorder %s27, 1
      %p134 = por %p132, %p133
      %p136 = scmp.ne.s32.totalorder %s121, %s135
      %p137 = scmp.eq.s32.totalorder %s27, 0
      %p138 = por %p136, %p137
      %s140 = sadd.s32 %s139, 1
      %p143 = scmp.eq.s32.totalorder %s21, 1
      %p144 = scmp.ne.s32.totalorder %s139, %s141
      %p145 = scmp.eq.s32.totalorder %s21, 0
      %p146 = por %p144, %p145
      %p147 = scmp.ne.s32.totalorder %s139, %s141
      %p148 = scmp.eq.s32.totalorder %s26, 1
      %p149 = por %p147, %p148
      %p150 = scmp.ne.s32.totalorder %s141, %s142
      %p151 = scmp.eq.s32.totalorder %s26, 0
      %p152 = por %p150, %p151
      %p153 = scmp.ne.s32.totalorder %s141, %s142
      %p154 = scmp.eq.s32.totalorder %s27, 1
      %p155 = por %p153, %p154
      %p157 = scmp.ne.s32.totalorder %s142, %s156
      %p158 = scmp.eq.s32.totalorder %s27, 0
      %p159 = por %p157, %p158
      %s161 = sadd.s32 %s160, 1
      %p164 = scmp.eq.s32.totalorder %s21, 1
      %p165 = scmp.ne.s32.totalorder %s160, %s162
      %p166 = scmp.eq.s32.totalorder %s21, 0
      %p167 = por %p165, %p166
      %p168 = scmp.ne.s32.totalorder %s160, %s162
      %p169 = scmp.eq.s32.totalorder %s26, 1
      %p170 = por %p168, %p169
      %p171 = scmp.ne.s32.totalorder %s162, %s163
      %p172 = scmp.eq.s32.totalorder %s26, 0
      %p173 = por %p171, %p172
      %p174 = scmp.ne.s32.totalorder %s162, %s163
      %p175 = scmp.eq.s32.totalorder %s27, 1
      %p176 = por %p174, %p175
      %p178 = scmp.ne.s32.totalorder %s163, %s177
      %p179 = scmp.eq.s32.totalorder %s27, 0
      %p180 = por %p178, %p179
      %s182 = sadd.s32 %s181, 1
      %p185 = scmp.eq.s32.totalorder %s21, 1
      %p186 = scmp.ne.s32.totalorder %s181, %s183
      %p187 = scmp.eq.s32.totalorder %s21, 0
      %p188 = por %p186, %p187
      %p189 = scmp.ne.s32.totalorder %s181, %s183
      %p190 = scmp.eq.s32.totalorder %s26, 1
      %p191 = por %p189, %p190
      %p192 = scmp.ne.s32.totalorder %s183, %s184
      %p193 = scmp.eq.s32.totalorder %s26, 0
      %p194 = por %p192, %p193
      %p195 = scmp.ne.s32.totalorder %s183, %s184
      %p196 = scmp.eq.s32.totalorder %s27, 1
      %p197 = por %p195, %p196
      %p199 = scmp.ne.s32.totalorder %s184, %s198
      %p200 = scmp.eq.s32.totalorder %s27, 0
      %p201 = por %p199, %p200
      %s203 = sadd.s32 %s202, 1
      %p206 = scmp.eq.s32.totalorder %s21, 1
      %p207 = scmp.ne.s32.totalorder %s202, %s204
      %p208 = scmp.eq.s32.totalorder %s21, 0
      %p209 = por %p207, %p208
      %p210 = scmp.ne.s32.totalorder %s202, %s204
      %p211 = scmp.eq.s32.totalorder %s26, 1
      %p212 = por %p210, %p211
      %p213 = scmp.ne.s32.totalorder %s204, %s205
      %p214 = scmp.eq.s32.totalorder %s26, 0
      %p215 = por %p213, %p214
      %p216 = scmp.ne.s32.totalorder %s204, %s205
      %p217 = scmp.eq.s32.totalorder %s27, 1
      %p218 = por %p216, %p217
      %p220 = scmp.ne.s32.totalorder %s205, %s219
      %p221 = scmp.eq.s32.totalorder %s27, 0
      %p222 = por %p220, %p221
      %s224 = sadd.s32 %s223, 1
      %p227 = scmp.eq.s32.totalorder %s21, 1
      %p228 = scmp.ne.s32.totalorder %s223, %s225
      %p229 = scmp.eq.s32.totalorder %s21, 0
      %p230 = por %p228, %p229
      %p231 = scmp.ne.s32.totalorder %s223, %s225
      %p232 = scmp.eq.s32.totalorder %s26, 1
      %p233 = por %p231, %p232
      %p234 = scmp.ne.s32.totalorder %s225, %s226
      %p235 = scmp.eq.s32.totalorder %s26, 0
      %p236 = por %p234, %p235
      %p237 = scmp.ne.s32.totalorder %s225, %s226
      %p238 = scmp.eq.s32.totalorder %s27, 1
      %p239 = por %p237, %p238
      %p241 = scmp.ne.s32.totalorder %s226, %s240
      %p242 = scmp.eq.s32.totalorder %s27, 0
      %p243 = por %p241, %p242
      %s245 = sadd.s32 %s244, 1
      %p248 = scmp.eq.s32.totalorder %s21, 1
      %p249 = scmp.ne.s32.totalorder %s244, %s246
      %p250 = scmp.eq.s32.totalorder %s21, 0
      %p251 = por %p249, %p250
      %p252 = scmp.ne.s32.totalorder %s244, %s246
      %p253 = scmp.eq.s32.totalorder %s26, 1
      %p254 = por %p252, %p253
      %p255 = scmp.ne.s32.totalorder %s246, %s247
      %p256 = scmp.eq.s32.totalorder %s26, 0
      %p257 = por %p255, %p256
      %p258 = scmp.ne.s32.totalorder %s246, %s247
      %p259 = scmp.eq.s32.totalorder %s27, 1
      %p260 = por %p258, %p259
      %p262 = scmp.ne.s32.totalorder %s247, %s261
      %p263 = scmp.eq.s32.totalorder %s27, 0
      %p264 = por %p262, %p263
      %s265 = ssub.s32 %s21, %s28
      %p266 = scmp.eq.s32.totalorder %s265, 0
      %s268 = sadd.s32 %s267, 1
      %s269 = scalar_select %p266, %s267, %s268
      %p272 = pneg %p266
      %p273 = scmp.eq.s32.totalorder %s21, 1
      %p274 = por %p272, %p273
      %p275 = scmp.ne.s32.totalorder %s267, %s270
      %p276 = scmp.eq.s32.totalorder %s21, 0
      %p277 = por %p275, %p276
      %p278 = scmp.ne.s32.totalorder %s267, %s270
      %p279 = scmp.eq.s32.totalorder %s26, 1
      %p280 = por %p278, %p279
      %p281 = scmp.ne.s32.totalorder %s270, %s271
      %p282 = scmp.eq.s32.totalorder %s26, 0
      %p283 = por %p281, %p282
      %p284 = scmp.ne.s32.totalorder %s270, %s271
      %p285 = scmp.eq.s32.totalorder %s27, 1
      %p286 = por %p284, %p285
      %p288 = scmp.ne.s32.totalorder %s271, %s287
      %p289 = scmp.eq.s32.totalorder %s27, 0
      %p290 = por %p288, %p289
      %p291 = scmp.le.s32.totalorder 1, %s21
      %p292 = scmp.lt.s32.totalorder %s21, 3
      %p293 = pnand %p291, %p292
      %p294 = pneg %p293
      // Predicated region
      $region9: #{tpu_custom_call.1} parent=5 // pred_check
        _
      $region10: #{tpu_custom_call.1} parent=5 // pred_check_branch
        %296 = sbr.rel (%p293) target = $region12
      $region11: #{tpu_custom_call.1} parent=5 // pred_region
        %s297 = ssub.s32 %s21, 1
        // Predicated region
        $region13: #{tpu_custom_call.1} parent=11 // pred_check
          %p298 = pneg %p68
        $region14: #{tpu_custom_call.1} parent=11 // pred_check_branch
          %300 = sbr.rel (%p298) target = $region16
        $region15: #{tpu_custom_call.1} parent=11 // pred_region
          _
        $region16: #{tpu_custom_call.1} parent=11 // pred_fallthru
          _
        // Predicated region
        $region17: #{tpu_custom_call.1} parent=11 // pred_check
          %p301 = pneg %p89
        $region18: #{tpu_custom_call.1} parent=11 // pred_check_branch
          %303 = sbr.rel (%p301) target = $region20
        $region19: #{tpu_custom_call.1} parent=11 // pred_region
          _
        $region20: #{tpu_custom_call.1} parent=11 // pred_fallthru
          _
        // Predicated region
        $region21: #{tpu_custom_call.1} parent=11 // pred_check
          %p304 = pneg %p110
        $region22: #{tpu_custom_call.1} parent=11 // pred_check_branch
          %306 = sbr.rel (%p304) target = $region24
        $region23: #{tpu_custom_call.1} parent=11 // pred_region
          %s308 = ssub.s32 8192, 8192
          %309 = vsyncadd [#allocation3], %s308
          %s310 = sshll.u32 [#allocation2], 4
          %s311 = int_to_ptr.vmem [resolvable:$true] %s310
          %316 = dma.hbm_to_vmem [thread:$0]  %s3, 8192, %s311, [#allocation3], 128, 128, 8
        $region24: #{tpu_custom_call.1} parent=11 // pred_fallthru
          _
        // Predicated region
        $region25: #{tpu_custom_call.1} parent=11 // pred_check
          %p317 = pneg %p131
        $region26: #{tpu_custom_call.1} parent=11 // pred_check_branch
          %319 = sbr.rel (%p317) target = $region28
        $region27: #{tpu_custom_call.1} parent=11 // pred_region
          _
        $region28: #{tpu_custom_call.1} parent=11 // pred_fallthru
          _
        // Predicated region
        $region29: #{tpu_custom_call.1} parent=11 // pred_check
          %p320 = pneg %p152
        $region30: #{tpu_custom_call.1} parent=11 // pred_check_branch
          %322 = sbr.rel (%p320) target = $region32
        $region31: #{tpu_custom_call.1} parent=11 // pred_region
          _
        $region32: #{tpu_custom_call.1} parent=11 // pred_fallthru
          _
        // Predicated region
        $region33: #{tpu_custom_call.1} parent=11 // pred_check
          %p323 = pneg %p173
        $region34: #{tpu_custom_call.1} parent=11 // pred_check_branch
          %325 = sbr.rel (%p323) target = $region36
        $region35: #{tpu_custom_call.1} parent=11 // pred_region
          _
        $region36: #{tpu_custom_call.1} parent=11 // pred_fallthru
          _
        // Predicated region
        $region37: #{tpu_custom_call.1} parent=11 // pred_check
          %p326 = pneg %p194
        $region38: #{tpu_custom_call.1} parent=11 // pred_check_branch
          %328 = sbr.rel (%p326) target = $region40
        $region39: #{tpu_custom_call.1} parent=11 // pred_region
          _
        $region40: #{tpu_custom_call.1} parent=11 // pred_fallthru
          _
        // Predicated region
        $region41: #{tpu_custom_call.1} parent=11 // pred_check
          %p329 = pneg %p215
        $region42: #{tpu_custom_call.1} parent=11 // pred_check_branch
          %331 = sbr.rel (%p329) target = $region44
        $region43: #{tpu_custom_call.1} parent=11 // pred_region
          _
        $region44: #{tpu_custom_call.1} parent=11 // pred_fallthru
          _
        // Predicated region
        $region45: #{tpu_custom_call.1} parent=11 // pred_check
          %p332 = pneg %p236
        $region46: #{tpu_custom_call.1} parent=11 // pred_check_branch
          %334 = sbr.rel (%p332) target = $region48
        $region47: #{tpu_custom_call.1} parent=11 // pred_region
          _
        $region48: #{tpu_custom_call.1} parent=11 // pred_fallthru
          _
        // Predicated region
        $region49: #{tpu_custom_call.1} parent=11 // pred_check
          %p335 = pneg %p257
        $region50: #{tpu_custom_call.1} parent=11 // pred_check_branch
          %337 = sbr.rel (%p335) target = $region52
        $region51: #{tpu_custom_call.1} parent=11 // pred_region
          _
        $region52: #{tpu_custom_call.1} parent=11 // pred_fallthru
          _
      $region12: #{tpu_custom_call.1} parent=5 // pred_fallthru
        _
      %p338 = scmp.lt.s32.totalorder %s21, 2
      // Predicated region
      $region53: #{tpu_custom_call.1} parent=5 // pred_check
        %p339 = pneg %p338
      $region54: #{tpu_custom_call.1} parent=5 // pred_check_branch
        %341 = sbr.rel (%p339) target = $region56
      $region55: #{tpu_custom_call.1} parent=5 // pred_region
        // Predicated region
        $region57: #{tpu_custom_call.1} parent=55 // pred_check
          %p342 = pneg %p41
        $region58: #{tpu_custom_call.1} parent=55 // pred_check_branch
          %344 = sbr.rel (%p342) target = $region60
        $region59: #{tpu_custom_call.1} parent=55 // pred_region
          %s345 = smul.u32 16, %s21
          %p346 = scmp.lt.s32.totalorder %s345, 31
          %s347 = scalar_select %p346, %s345, 31
          %s348 = smul.addr %s347, 4
          %s349 = scalar_lea.vmem %s0, %s348
          %s350 = smul.u32 16, %s21
        $region60: #{tpu_custom_call.1} parent=55 // pred_fallthru
          _
      $region56: #{tpu_custom_call.1} parent=5 // pred_fallthru
        _
      %p351 = scmp.le.s32.totalorder 1, %s21
      %p352 = scmp.lt.s32.totalorder %s21, 3
      %p353 = pnand %p351, %p352
      %p354 = pneg %p353
      // Predicated region
      $region61: #{tpu_custom_call.1} parent=5 // pred_check
        _
      $region62: #{tpu_custom_call.1} parent=5 // pred_check_branch
        %356 = sbr.rel (%p353) target = $region64
      $region63: #{tpu_custom_call.1} parent=5 // pred_region
        %s357 = ssub.s32 %s21, 1
        // Predicated region
        $region65: #{tpu_custom_call.1} parent=63 // pred_check
          %p358 = pneg %p110
        $region66: #{tpu_custom_call.1} parent=63 // pred_check_branch
          %360 = sbr.rel (%p358) target = $region68
        $region67: #{tpu_custom_call.1} parent=63 // pred_region
          %361 = dma.done [#allocation3], 8192
        $region68: #{tpu_custom_call.1} parent=63 // pred_fallthru
          _
        %s362 = smul.u32 16, %s26
        %p363 = scmp.lt.s32.totalorder %s362, 31
        %s364 = scalar_select %p363, %s362, 31
        %s365 = smul.addr %s364, 4
        %s366 = scalar_lea.vmem %s0, %s365
        %p367 = pneg %p47
        %p368 = pneg %p44
        %p369 = pneg %p68
        %p370 = pneg %p65
        %p371 = pneg %p89
        %p372 = pneg %p86
        %p373 = pneg %p110
        %p374 = pneg %p107
        %p375 = pneg %p131
        %p376 = pneg %p128
        %p377 = pneg %p152
        %p378 = pneg %p149
        %p379 = pneg %p173
        %p380 = pneg %p170
        %p381 = pneg %p194
        %p382 = pneg %p191
        %p383 = pneg %p215
        %p384 = pneg %p212
        %p385 = pneg %p236
        %p386 = pneg %p233
        %p387 = pneg %p257
        %p388 = pneg %p254
        %p389 = pneg %p283
        %p390 = pneg %p280
        %s391 = sand.u32 %s270, 1
        %s392 = scalar_lea.sflag [#allocation4], %s391
        %s393 = sand.u32 %s270, 1
        %s394 = smul.addr %s393, 128
        %s395 = scalar_lea.vmem [#allocation5], %s394
        %s396 = smul.u32 16, %s26
        %p397 = scmp.lt.s32.totalorder %s396, 31
        %s398 = scalar_select %p397, %s396, 31
        %s399 = smul.addr %s398, 4
        %s400 = scalar_lea.vmem %s0, %s399
        %s401 = smul.u32 16, %s26
        %s402 = smul.u32 16, %s26
        %v404 = vld [vmem:[%s400] sm:$0xf]
        %v405 = vld [vmem:[%s400 + $0x4] sm:$0xf]
        %v406 = vld [vmem:[%s400 + $0x8] sm:$0xf]
        %v407 = vld [vmem:[%s400 + $0xc] sm:$0xf]
        %v408 = vld [vmem:[%s400 + $0x10] sm:$0xf]
        %v409 = vld [vmem:[%s400 + $0x14] sm:$0xf]
        %v410 = vld [vmem:[%s400 + $0x18] sm:$0xf]
        %v411 = vld [vmem:[%s400 + $0x1c] sm:$0xf]
        %v412 = vld [vmem:[%s400 + $0x20] sm:$0xf]
        %v413 = vld [vmem:[%s400 + $0x24] sm:$0xf]
        %v414 = vld [vmem:[%s400 + $0x28] sm:$0xf]
        %v415 = vld [vmem:[%s400 + $0x2c] sm:$0xf]
        %v416 = vld [vmem:[%s400 + $0x30] sm:$0xf]
        %v417 = vld [vmem:[%s400 + $0x34] sm:$0xf]
        %v418 = vld [vmem:[%s400 + $0x38] sm:$0xf]
        %v419 = vld [vmem:[%s400 + $0x3c] sm:$0xf]
        %v420 = vld [vmem:[%s1] sm:$0xff]
        %v421 = vld [vmem:[%s1 + $0x8] sm:$0xff]
        %v422 = vld [vmem:[%s1 + $0x10] sm:$0xff]
        %v423 = vld [vmem:[%s1 + $0x18] sm:$0xff]
        %v424 = vld [vmem:[%s1 + $0x20] sm:$0xff]
        %v425 = vld [vmem:[%s1 + $0x28] sm:$0xff]
        %v426 = vld [vmem:[%s1 + $0x30] sm:$0xff]
        %v427 = vld [vmem:[%s1 + $0x38] sm:$0xff]
        %v428 = vld [vmem:[%s2] sm:$0xf]
        %v430 = vlaneseq
        %v431 = vshrl.u32 %v430, 7
        %v432 = vsub.s32 0, %v431
        %v433 = vrot.slane %v428, %v432
        %v434 = vlaneseq
        %v435 = vshrl.u32 %v434, 7
        %v436 = vsub.s32 1, %v435
        %v437 = vrot.slane %v428, %v436
        %v438 = vlaneseq
        %v439 = vshrl.u32 %v438, 7
        %v440 = vsub.s32 2, %v439
        %v441 = vrot.slane %v428, %v440
        %v442 = vlaneseq
        %v443 = vshrl.u32 %v442, 7
        %v444 = vsub.s32 3, %v443
        %v445 = vrot.slane %v428, %v444
        %v466 = vunpack.c.l.b16 %v404
        %v467 = vunpack.c.l.b16 %v405
        %v468 = vunpack.c.l.b16 %v406
        %v469 = vunpack.c.l.b16 %v407
        %v470 = vunpack.c.l.b16 %v408
        %v471 = vunpack.c.l.b16 %v409
        %v472 = vunpack.c.l.b16 %v410
        %v473 = vunpack.c.l.b16 %v411
        %v474 = vunpack.c.l.b16 %v412
        %v475 = vunpack.c.l.b16 %v413
        %v476 = vunpack.c.l.b16 %v414
        %v477 = vunpack.c.l.b16 %v415
        %v478 = vunpack.c.l.b16 %v416
        %v479 = vunpack.c.l.b16 %v417
        %v480 = vunpack.c.l.b16 %v418
        %v481 = vunpack.c.l.b16 %v419
        %v482 = vpack.c.b16 %v467, %v466
        %v483 = vpack.c.b16 %v469, %v468
        %v484 = vpack.c.b16 %v471, %v470
        %v485 = vpack.c.b16 %v473, %v472
        %v486 = vpack.c.b16 %v475, %v474
        %v487 = vpack.c.b16 %v477, %v476
        %v488 = vpack.c.b16 %v479, %v478
        %v489 = vpack.c.b16 %v481, %v480
        %v498 = vunpack.c.l.b16 %v420
        %v499 = vunpack.c.h.b16 %v420
        %v500 = vunpack.c.l.b16 %v421
        %v501 = vunpack.c.h.b16 %v421
        %v502 = vunpack.c.l.b16 %v422
        %v503 = vunpack.c.h.b16 %v422
        %v504 = vunpack.c.l.b16 %v423
        %v505 = vunpack.c.h.b16 %v423
        %v506 = vunpack.c.l.b16 %v424
        %v507 = vunpack.c.h.b16 %v424
        %v508 = vunpack.c.l.b16 %v425
        %v509 = vunpack.c.h.b16 %v425
        %v510 = vunpack.c.l.b16 %v426
        %v511 = vunpack.c.h.b16 %v426
        %v512 = vunpack.c.l.b16 %v427
        %v513 = vunpack.c.h.b16 %v427
        %v514 = vpack.c.b16 %v502, %v498
        %v515 = vpack.c.b16 %v503, %v499
        %v516 = vpack.c.b16 %v504, %v500
        %v517 = vpack.c.b16 %v505, %v501
        %v518 = vpack.c.b16 %v510, %v506
        %v519 = vpack.c.b16 %v511, %v507
        %v520 = vpack.c.b16 %v512, %v508
        %v521 = vpack.c.b16 %v513, %v509
        %vm530 = vcmask 261120
        %v532 = vsel %vm530, %v482, 0
        %v535 = vsel %vm530, %v483, 0
        %v538 = vsel %vm530, %v484, 0
        %v541 = vsel %vm530, %v485, 0
        %v544 = vsel %vm530, %v486, 0
        %v547 = vsel %vm530, %v487, 0
        %v550 = vsel %vm530, %v488, 0
        %v553 = vsel %vm530, %v489, 0
        %555 = vmatprep.subr.bf16.mxu0 %v515
        %556 = vmatpush1.bf16.msra.mxu0 %v514
        %557 = vmatprep.subr.bf16.mxu0 %v519
        %558 = vmatpush1.bf16.msra.mxu0 %v518
        %559 = vmatprep.subr.bf16.mxu0 0
        %560 = vmatpush1.bf16.msra.mxu0 0
        %561 = vmatprep.subr.bf16.mxu0 0
        %562 = vmatpush1.bf16.msra.mxu0 0
        %563 = vmatprep.subr.bf16.mxu0 0
        %564 = vmatpush1.bf16.msra.mxu0 0
        %565 = vmatprep.subr.bf16.mxu0 0
        %566 = vmatpush1.bf16.msra.mxu0 0
        %567 = vmatprep.subr.bf16.mxu0 0
        %568 = vmatpush1.bf16.msra.mxu0 0
        %569 = vmatprep.subr.bf16.mxu0 0
        %570 = vmatpush1.bf16.msra.mxu0 0
        %571 = vmatprep.subr.bf16.mxu0 0
        %572 = vmatpush1.bf16.msra.mxu0 0
        %573 = vmatprep.subr.bf16.mxu0 0
        %574 = vmatpush1.bf16.msra.mxu0 0
        %575 = vmatprep.subr.bf16.mxu0 0
        %576 = vmatpush1.bf16.msra.mxu0 0
        %577 = vmatprep.subr.bf16.mxu0 0
        %578 = vmatpush1.bf16.msra.mxu0 0
        %579 = vmatprep.subr.bf16.mxu0 0
        %580 = vmatpush1.bf16.msra.mxu0 0
        %581 = vmatprep.subr.bf16.mxu0 0
        %582 = vmatpush1.bf16.msra.mxu0 0
        %583 = vmatprep.subr.bf16.mxu0 0
        %584 = vmatpush1.bf16.msra.mxu0 0
        %585 = vmatprep.subr.bf16.mxu0 0
        %586 = vmatpush1.bf16.msra.mxu0 0
        %587 = vmatprep.mubr.bf16.mxu0 0
        %588 = vmatmul.mubr.bf16.gmra.mrb[0].mxu0 %v532
        %v589 = vpop.f32.mrb[0].mxu0
        %v590 = vadd.f32 %v433, %v589
        %v591 = vpop.f32.mrb[0].mxu0
        %v592 = vadd.f32 %v437, %v591
        %v593 = vpop.f32.mrb[0].mxu0
        %v594 = vadd.f32 %v433, %v593
        %v595 = vpop.f32.mrb[0].mxu0
        %v596 = vadd.f32 %v437, %v595
        %597 = vmatprep.mubr.bf16.mxu0 0
        %598 = vmatmul.mubr.bf16.gmra.mrb[0].mxu0 %v535
        %v599 = vpop.f32.mrb[0].mxu0
        %v600 = vadd.f32 %v433, %v599
        %v601 = vpop.f32.mrb[0].mxu0
        %v602 = vadd.f32 %v437, %v601
        %v603 = vpop.f32.mrb[0].mxu0
        %v604 = vadd.f32 %v433, %v603
        %v605 = vpop.f32.mrb[0].mxu0
        %v606 = vadd.f32 %v437, %v605
        %607 = vmatprep.mubr.bf16.mxu0 0
        %608 = vmatmul.mubr.bf16.gmra.mrb[0].mxu0 %v538
        %v609 = vpop.f32.mrb[0].mxu0
        %v610 = vadd.f32 %v433, %v609
        %v611 = vpop.f32.mrb[0].mxu0
        %v612 = vadd.f32 %v437, %v611
        %v613 = vpop.f32.mrb[0].mxu0
        %v614 = vadd.f32 %v433, %v613
        %v615 = vpop.f32.mrb[0].mxu0
        %v616 = vadd.f32 %v437, %v615
        %617 = vmatprep.mubr.bf16.mxu0 0
        %618 = vmatmul.mubr.bf16.gmra.mrb[0].mxu0 %v541
        %v619 = vpop.f32.mrb[0].mxu0
        %v620 = vadd.f32 %v433, %v619
        %v621 = vpop.f32.mrb[0].mxu0
        %v622 = vadd.f32 %v437, %v621
        %v623 = vpop.f32.mrb[0].mxu0
        %v624 = vadd.f32 %v433, %v623
        %v625 = vpop.f32.mrb[0].mxu0
        %v626 = vadd.f32 %v437, %v625
        %627 = vmatprep.mubr.bf16.mxu0 0
        %628 = vmatmul.mubr.bf16.gmra.mrb[0].mxu0 %v544
        %v629 = vpop.f32.mrb[0].mxu0
        %v630 = vadd.f32 %v433, %v629
        %v631 = vpop.f32.mrb[0].mxu0
        %v632 = vadd.f32 %v437, %v631
        %v633 = vpop.f32.mrb[0].mxu0
        %v634 = vadd.f32 %v433, %v633
        %v635 = vpop.f32.mrb[0].mxu0
        %v636 = vadd.f32 %v437, %v635
        %637 = vmatprep.mubr.bf16.mxu0 0
        %638 = vmatmul.mubr.bf16.gmra.mrb[0].mxu0 %v547
        %v639 = vpop.f32.mrb[0].mxu0
        %v640 = vadd.f32 %v433, %v639
        %v641 = vpop.f32.mrb[0].mxu0
        %v642 = vadd.f32 %v437, %v641
        %v643 = vpop.f32.mrb[0].mxu0
        %v644 = vadd.f32 %v433, %v643
        %v645 = vpop.f32.mrb[0].mxu0
        %v646 = vadd.f32 %v437, %v645
        %647 = vmatprep.mubr.bf16.mxu0 0
        %648 = vmatmul.mubr.bf16.gmra.mrb[0].mxu0 %v550
        %v649 = vpop.f32.mrb[0].mxu0
        %v650 = vadd.f32 %v433, %v649
        %v651 = vpop.f32.mrb[0].mxu0
        %v652 = vadd.f32 %v437, %v651
        %v653 = vpop.f32.mrb[0].mxu0
        %v654 = vadd.f32 %v433, %v653
        %v655 = vpop.f32.mrb[0].mxu0
        %v656 = vadd.f32 %v437, %v655
        %657 = vmatprep.mubr.bf16.mxu0 0
        %658 = vmatmul.mubr.bf16.gmra.mrb[0].mxu0 %v553
        %v659 = vpop.f32.mrb[0].mxu0
        %v660 = vadd.f32 %v433, %v659
        %v661 = vpop.f32.mrb[0].mxu0
        %v662 = vadd.f32 %v437, %v661
        %v663 = vpop.f32.mrb[0].mxu0
        %v664 = vadd.f32 %v433, %v663
        %v665 = vpop.f32.mrb[0].mxu0
        %v666 = vadd.f32 %v437, %v665
        %667 = vdwg.mxu0
        %668 = vmatprep.subr.bf16.mxu0 %v517
        %669 = vmatpush1.bf16.msra.mxu0 %v516
        %670 = vmatprep.subr.bf16.mxu0 %v521
        %671 = vmatpush1.bf16.msra.mxu0 %v520
        %672 = vmatprep.subr.bf16.mxu0 0
        %673 = vmatpush1.bf16.msra.mxu0 0
        %674 = vmatprep.subr.bf16.mxu0 0
        %675 = vmatpush1.bf16.msra.mxu0 0
        %676 = vmatprep.subr.bf16.mxu0 0
        %677 = vmatpush1.bf16.msra.mxu0 0
        %678 = vmatprep.subr.bf16.mxu0 0
        %679 = vmatpush1.bf16.msra.mxu0 0
        %680 = vmatprep.subr.bf16.mxu0 0
        %681 = vmatpush1.bf16.msra.mxu0 0
        %682 = vmatprep.subr.bf16.mxu0 0
        %683 = vmatpush1.bf16.msra.mxu0 0
        %684 = vmatprep.subr.bf16.mxu0 0
        %685 = vmatpush1.bf16.msra.mxu0 0
        %686 = vmatprep.subr.bf16.mxu0 0
        %687 = vmatpush1.bf16.msra.mxu0 0
        %688 = vmatprep.subr.bf16.mxu0 0
        %689 = vmatpush1.bf16.msra.mxu0 0
        %690 = vmatprep.subr.bf16.mxu0 0
        %691 = vmatpush1.bf16.msra.mxu0 0
        %692 = vmatprep.subr.bf16.mxu0 0
        %693 = vmatpush1.bf16.msra.mxu0 0
        %694 = vmatprep.subr.bf16.mxu0 0
        %695 = vmatpush1.bf16.msra.mxu0 0
        %696 = vmatprep.subr.bf16.mxu0 0
        %697 = vmatpush1.bf16.msra.mxu0 0
        %698 = vmatprep.subr.bf16.mxu0 0
        %699 = vmatpush1.bf16.msra.mxu0 0
        %700 = vmatprep.mubr.bf16.mxu0 0
        %701 = vmatmul.mubr.bf16.gmra.mrb[0].mxu0 %v532
        %v702 = vpop.f32.mrb[0].mxu0
        %v703 = vadd.f32 %v441, %v702
        %v704 = vpop.f32.mrb[0].mxu0
        %v705 = vadd.f32 %v445, %v704
        %v706 = vpop.f32.mrb[0].mxu0
        %v707 = vadd.f32 %v441, %v706
        %v708 = vpop.f32.mrb[0].mxu0
        %v709 = vadd.f32 %v445, %v708
        %710 = vmatprep.mubr.bf16.mxu0 0
        %711 = vmatmul.mubr.bf16.gmra.mrb[0].mxu0 %v535
        %v712 = vpop.f32.mrb[0].mxu0
        %v713 = vadd.f32 %v441, %v712
        %v714 = vpop.f32.mrb[0].mxu0
        %v715 = vadd.f32 %v445, %v714
        %v716 = vpop.f32.mrb[0].mxu0
        %v717 = vadd.f32 %v441, %v716
        %v718 = vpop.f32.mrb[0].mxu0
        %v719 = vadd.f32 %v445, %v718
        %720 = vmatprep.mubr.bf16.mxu0 0
        %721 = vmatmul.mubr.bf16.gmra.mrb[0].mxu0 %v538
        %v722 = vpop.f32.mrb[0].mxu0
        %v723 = vadd.f32 %v441, %v722
        %v724 = vpop.f32.mrb[0].mxu0
        %v725 = vadd.f32 %v445, %v724
        %v726 = vpop.f32.mrb[0].mxu0
        %v727 = vadd.f32 %v441, %v726
        %v728 = vpop.f32.mrb[0].mxu0
        %v729 = vadd.f32 %v445, %v728
        %730 = vmatprep.mubr.bf16.mxu0 0
        %731 = vmatmul.mubr.bf16.gmra.mrb[0].mxu0 %v541
        %v732 = vpop.f32.mrb[0].mxu0
        %v733 = vadd.f32 %v441, %v732
        %v734 = vpop.f32.mrb[0].mxu0
        %v735 = vadd.f32 %v445, %v734
        %v736 = vpop.f32.mrb[0].mxu0
        %v737 = vadd.f32 %v441, %v736
        %v738 = vpop.f32.mrb[0].mxu0
        %v739 = vadd.f32 %v445, %v738
        %740 = vmatprep.mubr.bf16.mxu0 0
        %741 = vmatmul.mubr.bf16.gmra.mrb[0].mxu0 %v544
        %v742 = vpop.f32.mrb[0].mxu0
        %v743 = vadd.f32 %v441, %v742
        %v744 = vpop.f32.mrb[0].mxu0
        %v745 = vadd.f32 %v445, %v744
        %v746 = vpop.f32.mrb[0].mxu0
        %v747 = vadd.f32 %v441, %v746
        %v748 = vpop.f32.mrb[0].mxu0
        %v749 = vadd.f32 %v445, %v748
        %750 = vmatprep.mubr.bf16.mxu0 0
        %751 = vmatmul.mubr.bf16.gmra.mrb[0].mxu0 %v547
        %v752 = vpop.f32.mrb[0].mxu0
        %v753 = vadd.f32 %v441, %v752
        %v754 = vpop.f32.mrb[0].mxu0
        %v755 = vadd.f32 %v445, %v754
        %v756 = vpop.f32.mrb[0].mxu0
        %v757 = vadd.f32 %v441, %v756
        %v758 = vpop.f32.mrb[0].mxu0
        %v759 = vadd.f32 %v445, %v758
        %760 = vmatprep.mubr.bf16.mxu0 0
        %761 = vmatmul.mubr.bf16.gmra.mrb[0].mxu0 %v550
        %v762 = vpop.f32.mrb[0].mxu0
        %v763 = vadd.f32 %v441, %v762
        %v764 = vpop.f32.mrb[0].mxu0
        %v765 = vadd.f32 %v445, %v764
        %v766 = vpop.f32.mrb[0].mxu0
        %v767 = vadd.f32 %v441, %v766
        %v768 = vpop.f32.mrb[0].mxu0
        %v769 = vadd.f32 %v445, %v768
        %770 = vmatprep.mubr.bf16.mxu0 0
        %771 = vmatmul.mubr.bf16.gmra.mrb[0].mxu0 %v553
        %v772 = vpop.f32.mrb[0].mxu0
        %v773 = vadd.f32 %v441, %v772
        %v774 = vpop.f32.mrb[0].mxu0
        %v775 = vadd.f32 %v445, %v774
        %v776 = vpop.f32.mrb[0].mxu0
        %v777 = vadd.f32 %v441, %v776
        %v778 = vpop.f32.mrb[0].mxu0
        %v779 = vadd.f32 %v445, %v778
        %780 = vdwg.mxu0
        %v781 = vmax.f32 %v590, 0.0
        %v782 = vmax.f32 %v592, 0.0
        %v783 = vmax.f32 %v703, 0.0
        %v784 = vmax.f32 %v705, 0.0
        %v785 = vmax.f32 %v594, 0.0
        %v786 = vmax.f32 %v596, 0.0
        %v787 = vmax.f32 %v707, 0.0
        %v788 = vmax.f32 %v709, 0.0
        %v789 = vmax.f32 %v600, 0.0
        %v790 = vmax.f32 %v602, 0.0
        %v791 = vmax.f32 %v713, 0.0
        %v792 = vmax.f32 %v715, 0.0
        %v793 = vmax.f32 %v604, 0.0
        %v794 = vmax.f32 %v606, 0.0
        %v795 = vmax.f32 %v717, 0.0
        %v796 = vmax.f32 %v719, 0.0
        %v797 = vmax.f32 %v610, 0.0
        %v798 = vmax.f32 %v612, 0.0
        %v799 = vmax.f32 %v723, 0.0
        %v800 = vmax.f32 %v725, 0.0
        %v801 = vmax.f32 %v614, 0.0
        %v802 = vmax.f32 %v616, 0.0
        %v803 = vmax.f32 %v727, 0.0
        %v804 = vmax.f32 %v729, 0.0
        %v805 = vmax.f32 %v620, 0.0
        %v806 = vmax.f32 %v622, 0.0
        %v807 = vmax.f32 %v733, 0.0
        %v808 = vmax.f32 %v735, 0.0
        %v809 = vmax.f32 %v624, 0.0
        %v810 = vmax.f32 %v626, 0.0
        %v811 = vmax.f32 %v737, 0.0
        %v812 = vmax.f32 %v739, 0.0
        %v813 = vmax.f32 %v630, 0.0
        %v814 = vmax.f32 %v632, 0.0
        %v815 = vmax.f32 %v743, 0.0
        %v816 = vmax.f32 %v745, 0.0
        %v817 = vmax.f32 %v634, 0.0
        %v818 = vmax.f32 %v636, 0.0
        %v819 = vmax.f32 %v747, 0.0
        %v820 = vmax.f32 %v749, 0.0
        %v821 = vmax.f32 %v640, 0.0
        %v822 = vmax.f32 %v642, 0.0
        %v823 = vmax.f32 %v753, 0.0
        %v824 = vmax.f32 %v755, 0.0
        %v825 = vmax.f32 %v644, 0.0
        %v826 = vmax.f32 %v646, 0.0
        %v827 = vmax.f32 %v757, 0.0
        %v828 = vmax.f32 %v759, 0.0
        %v829 = vmax.f32 %v650, 0.0
        %v830 = vmax.f32 %v652, 0.0
        %v831 = vmax.f32 %v763, 0.0
        %v832 = vmax.f32 %v765, 0.0
        %v833 = vmax.f32 %v654, 0.0
        %v834 = vmax.f32 %v656, 0.0
        %v835 = vmax.f32 %v767, 0.0
        %v836 = vmax.f32 %v769, 0.0
        %v837 = vmax.f32 %v660, 0.0
        %v838 = vmax.f32 %v662, 0.0
        %v839 = vmax.f32 %v773, 0.0
        %v840 = vmax.f32 %v775, 0.0
        %v841 = vmax.f32 %v664, 0.0
        %v842 = vmax.f32 %v666, 0.0
        %v843 = vmax.f32 %v777, 0.0
        %v844 = vmax.f32 %v779, 0.0
        %v845 = vpack.c.bf16 %v785, %v781
        %v846 = vpack.c.bf16 %v786, %v782
        %v847 = vpack.c.bf16 %v787, %v783
        %v848 = vpack.c.bf16 %v788, %v784
        %v849 = vpack.c.bf16 %v793, %v789
        %v850 = vpack.c.bf16 %v794, %v790
        %v851 = vpack.c.bf16 %v795, %v791
        %v852 = vpack.c.bf16 %v796, %v792
        %v853 = vpack.c.bf16 %v801, %v797
        %v854 = vpack.c.bf16 %v802, %v798
        %v855 = vpack.c.bf16 %v803, %v799
        %v856 = vpack.c.bf16 %v804, %v800
        %v857 = vpack.c.bf16 %v809, %v805
        %v858 = vpack.c.bf16 %v810, %v806
        %v859 = vpack.c.bf16 %v811, %v807
        %v860 = vpack.c.bf16 %v812, %v808
        %v861 = vpack.c.bf16 %v817, %v813
        %v862 = vpack.c.bf16 %v818, %v814
        %v863 = vpack.c.bf16 %v819, %v815
        %v864 = vpack.c.bf16 %v820, %v816
        %v865 = vpack.c.bf16 %v825, %v821
        %v866 = vpack.c.bf16 %v826, %v822
        %v867 = vpack.c.bf16 %v827, %v823
        %v868 = vpack.c.bf16 %v828, %v824
        %v869 = vpack.c.bf16 %v833, %v829
        %v870 = vpack.c.bf16 %v834, %v830
        %v871 = vpack.c.bf16 %v835, %v831
        %v872 = vpack.c.bf16 %v836, %v832
        %v873 = vpack.c.bf16 %v841, %v837
        %v874 = vpack.c.bf16 %v842, %v838
        %v875 = vpack.c.bf16 %v843, %v839
        %v876 = vpack.c.bf16 %v844, %v840
        %v877 = vld [vmem:[#allocation2] sm:$0xff]
        %v878 = vld [vmem:[#allocation2 + $0x8] sm:$0xff]
        %v879 = vld [vmem:[#allocation2 + $0x10] sm:$0xff]
        %v880 = vld [vmem:[#allocation2 + $0x18] sm:$0xff]
        %v881 = vld [vmem:[#allocation2 + $0x20] sm:$0xff]
        %v882 = vld [vmem:[#allocation2 + $0x28] sm:$0xff]
        %v883 = vld [vmem:[#allocation2 + $0x30] sm:$0xff]
        %v884 = vld [vmem:[#allocation2 + $0x38] sm:$0xff]
        %v885 = vld [vmem:[#allocation2 + $0x40] sm:$0xff]
        %v886 = vld [vmem:[#allocation2 + $0x48] sm:$0xff]
        %v887 = vld [vmem:[#allocation2 + $0x50] sm:$0xff]
        %v888 = vld [vmem:[#allocation2 + $0x58] sm:$0xff]
        %v889 = vld [vmem:[#allocation2 + $0x60] sm:$0xff]
        %v890 = vld [vmem:[#allocation2 + $0x68] sm:$0xff]
        %v891 = vld [vmem:[#allocation2 + $0x70] sm:$0xff]
        %v892 = vld [vmem:[#allocation2 + $0x78] sm:$0xff]
        %v893 = vld [vmem:[#allocation2 + $0x80] sm:$0xff]
        %v894 = vld [vmem:[#allocation2 + $0x88] sm:$0xff]
        %v895 = vld [vmem:[#allocation2 + $0x90] sm:$0xff]
        %v896 = vld [vmem:[#allocation2 + $0x98] sm:$0xff]
        %v897 = vld [vmem:[#allocation2 + $0xa0] sm:$0xff]
        %v898 = vld [vmem:[#allocation2 + $0xa8] sm:$0xff]
        %v899 = vld [vmem:[#allocation2 + $0xb0] sm:$0xff]
        %v900 = vld [vmem:[#allocation2 + $0xb8] sm:$0xff]
        %v901 = vld [vmem:[#allocation2 + $0xc0] sm:$0xff]
        %v902 = vld [vmem:[#allocation2 + $0xc8] sm:$0xff]
        %v903 = vld [vmem:[#allocation2 + $0xd0] sm:$0xff]
        %v904 = vld [vmem:[#allocation2 + $0xd8] sm:$0xff]
        %v905 = vld [vmem:[#allocation2 + $0xe0] sm:$0xff]
        %v906 = vld [vmem:[#allocation2 + $0xe8] sm:$0xff]
        %v907 = vld [vmem:[#allocation2 + $0xf0] sm:$0xff]
        %v908 = vld [vmem:[#allocation2 + $0xf8] sm:$0xff]
        %v909 = vld [vmem:[#allocation2 + $0x100] sm:$0xff]
        %v910 = vld [vmem:[#allocation2 + $0x108] sm:$0xff]
        %v911 = vld [vmem:[#allocation2 + $0x110] sm:$0xff]
        %v912 = vld [vmem:[#allocation2 + $0x118] sm:$0xff]
        %v913 = vld [vmem:[#allocation2 + $0x120] sm:$0xff]
        %v914 = vld [vmem:[#allocation2 + $0x128] sm:$0xff]
        %v915 = vld [vmem:[#allocation2 + $0x130] sm:$0xff]
        %v916 = vld [vmem:[#allocation2 + $0x138] sm:$0xff]
        %v917 = vld [vmem:[#allocation2 + $0x140] sm:$0xff]
        %v918 = vld [vmem:[#allocation2 + $0x148] sm:$0xff]
        %v919 = vld [vmem:[#allocation2 + $0x150] sm:$0xff]
        %v920 = vld [vmem:[#allocation2 + $0x158] sm:$0xff]
        %v921 = vld [vmem:[#allocation2 + $0x160] sm:$0xff]
        %v922 = vld [vmem:[#allocation2 + $0x168] sm:$0xff]
        %v923 = vld [vmem:[#allocation2 + $0x170] sm:$0xff]
        %v924 = vld [vmem:[#allocation2 + $0x178] sm:$0xff]
        %v925 = vld [vmem:[#allocation2 + $0x180] sm:$0xff]
        %v926 = vld [vmem:[#allocation2 + $0x188] sm:$0xff]
        %v927 = vld [vmem:[#allocation2 + $0x190] sm:$0xff]
        %v928 = vld [vmem:[#allocation2 + $0x198] sm:$0xff]
        %v929 = vld [vmem:[#allocation2 + $0x1a0] sm:$0xff]
        %v930 = vld [vmem:[#allocation2 + $0x1a8] sm:$0xff]
        %v931 = vld [vmem:[#allocation2 + $0x1b0] sm:$0xff]
        %v932 = vld [vmem:[#allocation2 + $0x1b8] sm:$0xff]
        %v933 = vld [vmem:[#allocation2 + $0x1c0] sm:$0xff]
        %v934 = vld [vmem:[#allocation2 + $0x1c8] sm:$0xff]
        %v935 = vld [vmem:[#allocation2 + $0x1d0] sm:$0xff]
        %v936 = vld [vmem:[#allocation2 + $0x1d8] sm:$0xff]
        %v937 = vld [vmem:[#allocation2 + $0x1e0] sm:$0xff]
        %v938 = vld [vmem:[#allocation2 + $0x1e8] sm:$0xff]
        %v939 = vld [vmem:[#allocation2 + $0x1f0] sm:$0xff]
        %v940 = vld [vmem:[#allocation2 + $0x1f8] sm:$0xff]
        %v941 = vld [vmem:[%s4] sm:$0x3]
        %v943 = vlaneseq
        %v944 = vshrl.u32 %v943, 7
        %v945 = vsub.s32 0, %v944
        %v946 = vrot.slane %v941, %v945
        %v947 = vlaneseq
        %v948 = vshrl.u32 %v947, 7
        %v949 = vsub.s32 1, %v948
        %v950 = vrot.slane %v941, %v949
        %v1017 = vunpack.c.l.b16 %v877
        %v1018 = vunpack.c.h.b16 %v877
        %v1019 = vunpack.c.l.b16 %v878
        %v1020 = vunpack.c.h.b16 %v878
        %v1021 = vunpack.c.l.b16 %v879
        %v1022 = vunpack.c.h.b16 %v879
        %v1023 = vunpack.c.l.b16 %v880
        %v1024 = vunpack.c.h.b16 %v880
        %v1025 = vunpack.c.l.b16 %v881
        %v1026 = vunpack.c.h.b16 %v881
        %v1027 = vunpack.c.l.b16 %v882
        %v1028 = vunpack.c.h.b16 %v882
        %v1029 = vunpack.c.l.b16 %v883
        %v1030 = vunpack.c.h.b16 %v883
        %v1031 = vunpack.c.l.b16 %v884
        %v1032 = vunpack.c.h.b16 %v884
        %v1033 = vunpack.c.l.b16 %v885
        %v1034 = vunpack.c.h.b16 %v885
        %v1035 = vunpack.c.l.b16 %v886
        %v1036 = vunpack.c.h.b16 %v886
        %v1037 = vunpack.c.l.b16 %v887
        %v1038 = vunpack.c.h.b16 %v887
        %v1039 = vunpack.c.l.b16 %v888
        %v1040 = vunpack.c.h.b16 %v888
        %v1041 = vunpack.c.l.b16 %v889
        %v1042 = vunpack.c.h.b16 %v889
        %v1043 = vunpack.c.l.b16 %v890
        %v1044 = vunpack.c.h.b16 %v890
        %v1045 = vunpack.c.l.b16 %v891
        %v1046 = vunpack.c.h.b16 %v891
        %v1047 = vunpack.c.l.b16 %v892
        %v1048 = vunpack.c.h.b16 %v892
        %v1049 = vunpack.c.l.b16 %v893
        %v1050 = vunpack.c.h.b16 %v893
        %v1051 = vunpack.c.l.b16 %v894
        %v1052 = vunpack.c.h.b16 %v894
        %v1053 = vunpack.c.l.b16 %v895
        %v1054 = vunpack.c.h.b16 %v895
        %v1055 = vunpack.c.l.b16 %v896
        %v1056 = vunpack.c.h.b16 %v896
        %v1057 = vunpack.c.l.b16 %v897
        %v1058 = vunpack.c.h.b16 %v897
        %v1059 = vunpack.c.l.b16 %v898
        %v1060 = vunpack.c.h.b16 %v898
        %v1061 = vunpack.c.l.b16 %v899
        %v1062 = vunpack.c.h.b16 %v899
        %v1063 = vunpack.c.l.b16 %v900
        %v1064 = vunpack.c.h.b16 %v900
        %v1065 = vunpack.c.l.b16 %v901
        %v1066 = vunpack.c.h.b16 %v901
        %v1067 = vunpack.c.l.b16 %v902
        %v1068 = vunpack.c.h.b16 %v902
        %v1069 = vunpack.c.l.b16 %v903
        %v1070 = vunpack.c.h.b16 %v903
        %v1071 = vunpack.c.l.b16 %v904
        %v1072 = vunpack.c.h.b16 %v904
        %v1073 = vunpack.c.l.b16 %v905
        %v1074 = vunpack.c.h.b16 %v905
        %v1075 = vunpack.c.l.b16 %v906
        %v1076 = vunpack.c.h.b16 %v906
        %v1077 = vunpack.c.l.b16 %v907
        %v1078 = vunpack.c.h.b16 %v907
        %v1079 = vunpack.c.l.b16 %v908
        %v1080 = vunpack.c.h.b16 %v908
        %v1081 = vunpack.c.l.b16 %v909
        %v1082 = vunpack.c.h.b16 %v909
        %v1083 = vunpack.c.l.b16 %v910
        %v1084 = vunpack.c.h.b16 %v910
        %v1085 = vunpack.c.l.b16 %v911
        %v1086 = vunpack.c.h.b16 %v911
        %v1087 = vunpack.c.l.b16 %v912
        %v1088 = vunpack.c.h.b16 %v912
        %v1089 = vunpack.c.l.b16 %v913
        %v1090 = vunpack.c.h.b16 %v913
        %v1091 = vunpack.c.l.b16 %v914
        %v1092 = vunpack.c.h.b16 %v914
        %v1093 = vunpack.c.l.b16 %v915
        %v1094 = vunpack.c.h.b16 %v915
        %v1095 = vunpack.c.l.b16 %v916
        %v1096 = vunpack.c.h.b16 %v916
        %v1097 = vunpack.c.l.b16 %v917
        %v1098 = vunpack.c.h.b16 %v917
        %v1099 = vunpack.c.l.b16 %v918
        %v1100 = vunpack.c.h.b16 %v918
        %v1101 = vunpack.c.l.b16 %v919
        %v1102 = vunpack.c.h.b16 %v919
        %v1103 = vunpack.c.l.b16 %v920
        %v1104 = vunpack.c.h.b16 %v920
        %v1105 = vunpack.c.l.b16 %v921
        %v1106 = vunpack.c.h.b16 %v921
        %v1107 = vunpack.c.l.b16 %v922
        %v1108 = vunpack.c.h.b16 %v922
        %v1109 = vunpack.c.l.b16 %v923
        %v1110 = vunpack.c.h.b16 %v923
        %v1111 = vunpack.c.l.b16 %v924
        %v1112 = vunpack.c.h.b16 %v924
        %v1113 = vunpack.c.l.b16 %v925
        %v1114 = vunpack.c.h.b16 %v925
        %v1115 = vunpack.c.l.b16 %v926
        %v1116 = vunpack.c.h.b16 %v926
        %v1117 = vunpack.c.l.b16 %v927
        %v1118 = vunpack.c.h.b16 %v927
        %v1119 = vunpack.c.l.b16 %v928
        %v1120 = vunpack.c.h.b16 %v928
        %v1121 = vunpack.c.l.b16 %v929
        %v1122 = vunpack.c.h.b16 %v929
        %v1123 = vunpack.c.l.b16 %v930
        %v1124 = vunpack.c.h.b16 %v930
        %v1125 = vunpack.c.l.b16 %v931
        %v1126 = vunpack.c.h.b16 %v931
        %v1127 = vunpack.c.l.b16 %v932
        %v1128 = vunpack.c.h.b16 %v932
        %v1129 = vunpack.c.l.b16 %v933
        %v1130 = vunpack.c.h.b16 %v933
        %v1131 = vunpack.c.l.b16 %v934
        %v1132 = vunpack.c.h.b16 %v934
        %v1133 = vunpack.c.l.b16 %v935
        %v1134 = vunpack.c.h.b16 %v935
        %v1135 = vunpack.c.l.b16 %v936
        %v1136 = vunpack.c.h.b16 %v936
        %v1137 = vunpack.c.l.b16 %v937
        %v1138 = vunpack.c.h.b16 %v937
        %v1139 = vunpack.c.l.b16 %v938
        %v1140 = vunpack.c.h.b16 %v938
        %v1141 = vunpack.c.l.b16 %v939
        %v1142 = vunpack.c.h.b16 %v939
        %v1143 = vunpack.c.l.b16 %v940
        %v1144 = vunpack.c.h.b16 %v940
        %v1145 = vpack.c.b16 %v1019, %v1017
        %v1146 = vpack.c.b16 %v1020, %v1018
        %v1147 = vpack.c.b16 %v1023, %v1021
        %v1148 = vpack.c.b16 %v1024, %v1022
        %v1149 = vpack.c.b16 %v1027, %v1025
        %v1150 = vpack.c.b16 %v1028, %v1026
        %v1151 = vpack.c.b16 %v1031, %v1029
        %v1152 = vpack.c.b16 %v1032, %v1030
        %v1153 = vpack.c.b16 %v1035, %v1033
        %v1154 = vpack.c.b16 %v1036, %v1034
        %v1155 = vpack.c.b16 %v1039, %v1037
        %v1156 = vpack.c.b16 %v1040, %v1038
        %v1157 = vpack.c.b16 %v1043, %v1041
        %v1158 = vpack.c.b16 %v1044, %v1042
        %v1159 = vpack.c.b16 %v1047, %v1045
        %v1160 = vpack.c.b16 %v1048, %v1046
        %v1161 = vpack.c.b16 %v1051, %v1049
        %v1162 = vpack.c.b16 %v1052, %v1050
        %v1163 = vpack.c.b16 %v1055, %v1053
        %v1164 = vpack.c.b16 %v1056, %v1054
        %v1165 = vpack.c.b16 %v1059, %v1057
        %v1166 = vpack.c.b16 %v1060, %v1058
        %v1167 = vpack.c.b16 %v1063, %v1061
        %v1168 = vpack.c.b16 %v1064, %v1062
        %v1169 = vpack.c.b16 %v1067, %v1065
        %v1170 = vpack.c.b16 %v1068, %v1066
        %v1171 = vpack.c.b16 %v1071, %v1069
        %v1172 = vpack.c.b16 %v1072, %v1070
        %v1173 = vpack.c.b16 %v1075, %v1073
        %v1174 = vpack.c.b16 %v1076, %v1074
        %v1175 = vpack.c.b16 %v1079, %v1077
        %v1176 = vpack.c.b16 %v1080, %v1078
        %v1177 = vpack.c.b16 %v1083, %v1081
        %v1178 = vpack.c.b16 %v1084, %v1082
        %v1179 = vpack.c.b16 %v1087, %v1085
        %v1180 = vpack.c.b16 %v1088, %v1086
        %v1181 = vpack.c.b16 %v1091, %v1089
        %v1182 = vpack.c.b16 %v1092, %v1090
        %v1183 = vpack.c.b16 %v1095, %v1093
        %v1184 = vpack.c.b16 %v1096, %v1094
        %v1185 = vpack.c.b16 %v1099, %v1097
        %v1186 = vpack.c.b16 %v1100, %v1098
        %v1187 = vpack.c.b16 %v1103, %v1101
        %v1188 = vpack.c.b16 %v1104, %v1102
        %v1189 = vpack.c.b16 %v1107, %v1105
        %v1190 = vpack.c.b16 %v1108, %v1106
        %v1191 = vpack.c.b16 %v1111, %v1109
        %v1192 = vpack.c.b16 %v1112, %v1110
        %v1193 = vpack.c.b16 %v1115, %v1113
        %v1194 = vpack.c.b16 %v1116, %v1114
        %v1195 = vpack.c.b16 %v1119, %v1117
        %v1196 = vpack.c.b16 %v1120, %v1118
        %v1197 = vpack.c.b16 %v1123, %v1121
        %v1198 = vpack.c.b16 %v1124, %v1122
        %v1199 = vpack.c.b16 %v1127, %v1125
        %v1200 = vpack.c.b16 %v1128, %v1126
        %v1201 = vpack.c.b16 %v1131, %v1129
        %v1202 = vpack.c.b16 %v1132, %v1130
        %v1203 = vpack.c.b16 %v1135, %v1133
        %v1204 = vpack.c.b16 %v1136, %v1134
        %v1205 = vpack.c.b16 %v1139, %v1137
        %v1206 = vpack.c.b16 %v1140, %v1138
        %v1207 = vpack.c.b16 %v1143, %v1141
        %v1208 = vpack.c.b16 %v1144, %v1142
        %1273 = vmatprep.subr.bf16.mxu0 %v1146
        %1274 = vmatpush1.bf16.msra.mxu0 %v1145
        %1275 = vmatprep.subr.bf16.mxu0 %v1148
        %1276 = vmatpush1.bf16.msra.mxu0 %v1147
        %1277 = vmatprep.subr.bf16.mxu0 %v1150
        %1278 = vmatpush1.bf16.msra.mxu0 %v1149
        %1279 = vmatprep.subr.bf16.mxu0 %v1152
        %1280 = vmatpush1.bf16.msra.mxu0 %v1151
        %1281 = vmatprep.subr.bf16.mxu0 %v1154
        %1282 = vmatpush1.bf16.msra.mxu0 %v1153
        %1283 = vmatprep.subr.bf16.mxu0 %v1156
        %1284 = vmatpush1.bf16.msra.mxu0 %v1155
        %1285 = vmatprep.subr.bf16.mxu0 %v1158
        %1286 = vmatpush1.bf16.msra.mxu0 %v1157
        %1287 = vmatprep.subr.bf16.mxu0 %v1160
        %1288 = vmatpush1.bf16.msra.mxu0 %v1159
        %1289 = vmatprep.subr.bf16.mxu0 %v1162
        %1290 = vmatpush1.bf16.msra.mxu0 %v1161
        %1291 = vmatprep.subr.bf16.mxu0 %v1164
        %1292 = vmatpush1.bf16.msra.mxu0 %v1163
        %1293 = vmatprep.subr.bf16.mxu0 %v1166
        %1294 = vmatpush1.bf16.msra.mxu0 %v1165
        %1295 = vmatprep.subr.bf16.mxu0 %v1168
        %1296 = vmatpush1.bf16.msra.mxu0 %v1167
        %1297 = vmatprep.subr.bf16.mxu0 %v1170
        %1298 = vmatpush1.bf16.msra.mxu0 %v1169
        %1299 = vmatprep.subr.bf16.mxu0 %v1172
        %1300 = vmatpush1.bf16.msra.mxu0 %v1171
        %1301 = vmatprep.subr.bf16.mxu0 %v1174
        %1302 = vmatpush1.bf16.msra.mxu0 %v1173
        %1303 = vmatprep.subr.bf16.mxu0 %v1176
        %1304 = vmatpush1.bf16.msra.mxu0 %v1175
        %1305 = vmatprep.mubr.bf16.mxu0 %v846
        %1306 = vmatmul.mubr.bf16.gmra.mrb[0].mxu0 %v845
        %v1307 = vpop.f32.mrb[0].mxu0
        %v1308 = vadd.f32 %v946, %v1307
        %v1309 = vpop.f32.mrb[0].mxu0
        %v1310 = vadd.f32 %v950, %v1309
        %v1311 = vpop.f32.mrb[0].mxu0
        %v1312 = vadd.f32 %v946, %v1311
        %v1313 = vpop.f32.mrb[0].mxu0
        %v1314 = vadd.f32 %v950, %v1313
        %1315 = vmatprep.mubr.bf16.mxu0 %v850
        %1316 = vmatmul.mubr.bf16.gmra.mrb[0].mxu0 %v849
        %v1317 = vpop.f32.mrb[0].mxu0
        %v1318 = vadd.f32 %v946, %v1317
        %v1319 = vpop.f32.mrb[0].mxu0
        %v1320 = vadd.f32 %v950, %v1319
        %v1321 = vpop.f32.mrb[0].mxu0
        %v1322 = vadd.f32 %v946, %v1321
        %v1323 = vpop.f32.mrb[0].mxu0
        %v1324 = vadd.f32 %v950, %v1323
        %1325 = vmatprep.mubr.bf16.mxu0 %v854
        %1326 = vmatmul.mubr.bf16.gmra.mrb[0].mxu0 %v853
        %v1327 = vpop.f32.mrb[0].mxu0
        %v1328 = vadd.f32 %v946, %v1327
        %v1329 = vpop.f32.mrb[0].mxu0
        %v1330 = vadd.f32 %v950, %v1329
        %v1331 = vpop.f32.mrb[0].mxu0
        %v1332 = vadd.f32 %v946, %v1331
        %v1333 = vpop.f32.mrb[0].mxu0
        %v1334 = vadd.f32 %v950, %v1333
        %1335 = vmatprep.mubr.bf16.mxu0 %v858
        %1336 = vmatmul.mubr.bf16.gmra.mrb[0].mxu0 %v857
        %v1337 = vpop.f32.mrb[0].mxu0
        %v1338 = vadd.f32 %v946, %v1337
        %v1339 = vpop.f32.mrb[0].mxu0
        %v1340 = vadd.f32 %v950, %v1339
        %v1341 = vpop.f32.mrb[0].mxu0
        %v1342 = vadd.f32 %v946, %v1341
        %v1343 = vpop.f32.mrb[0].mxu0
        %v1344 = vadd.f32 %v950, %v1343
        %1345 = vmatprep.mubr.bf16.mxu0 %v862
        %1346 = vmatmul.mubr.bf16.gmra.mrb[0].mxu0 %v861
        %v1347 = vpop.f32.mrb[0].mxu0
        %v1348 = vadd.f32 %v946, %v1347
        %v1349 = vpop.f32.mrb[0].mxu0
        %v1350 = vadd.f32 %v950, %v1349
        %v1351 = vpop.f32.mrb[0].mxu0
        %v1352 = vadd.f32 %v946, %v1351
        %v1353 = vpop.f32.mrb[0].mxu0
        %v1354 = vadd.f32 %v950, %v1353
        %1355 = vmatprep.mubr.bf16.mxu0 %v866
        %1356 = vmatmul.mubr.bf16.gmra.mrb[0].mxu0 %v865
        %v1357 = vpop.f32.mrb[0].mxu0
        %v1358 = vadd.f32 %v946, %v1357
        %v1359 = vpop.f32.mrb[0].mxu0
        %v1360 = vadd.f32 %v950, %v1359
        %v1361 = vpop.f32.mrb[0].mxu0
        %v1362 = vadd.f32 %v946, %v1361
        %v1363 = vpop.f32.mrb[0].mxu0
        %v1364 = vadd.f32 %v950, %v1363
        %1365 = vmatprep.mubr.bf16.mxu0 %v870
        %1366 = vmatmul.mubr.bf16.gmra.mrb[0].mxu0 %v869
        %v1367 = vpop.f32.mrb[0].mxu0
        %v1368 = vadd.f32 %v946, %v1367
        %v1369 = vpop.f32.mrb[0].mxu0
        %v1370 = vadd.f32 %v950, %v1369
        %v1371 = vpop.f32.mrb[0].mxu0
        %v1372 = vadd.f32 %v946, %v1371
        %v1373 = vpop.f32.mrb[0].mxu0
        %v1374 = vadd.f32 %v950, %v1373
        %1375 = vmatprep.mubr.bf16.mxu0 %v874
        %1376 = vmatmul.mubr.bf16.gmra.mrb[0].mxu0 %v873
        %v1377 = vpop.f32.mrb[0].mxu0
        %v1378 = vadd.f32 %v946, %v1377
        %v1379 = vpop.f32.mrb[0].mxu0
        %v1380 = vadd.f32 %v950, %v1379
        %v1381 = vpop.f32.mrb[0].mxu0
        %v1382 = vadd.f32 %v946, %v1381
        %v1383 = vpop.f32.mrb[0].mxu0
        %v1384 = vadd.f32 %v950, %v1383
        %1385 = vdwg.mxu0
        %1386 = vmatprep.subr.bf16.mxu0 %v1178
        %1387 = vmatpush1.bf16.msra.mxu0 %v1177
        %1388 = vmatprep.subr.bf16.mxu0 %v1180
        %1389 = vmatpush1.bf16.msra.mxu0 %v1179
        %1390 = vmatprep.subr.bf16.mxu0 %v1182
        %1391 = vmatpush1.bf16.msra.mxu0 %v1181
        %1392 = vmatprep.subr.bf16.mxu0 %v1184
        %1393 = vmatpush1.bf16.msra.mxu0 %v1183
        %1394 = vmatprep.subr.bf16.mxu0 %v1186
        %1395 = vmatpush1.bf16.msra.mxu0 %v1185
        %1396 = vmatprep.subr.bf16.mxu0 %v1188
        %1397 = vmatpush1.bf16.msra.mxu0 %v1187
        %1398 = vmatprep.subr.bf16.mxu0 %v1190
        %1399 = vmatpush1.bf16.msra.mxu0 %v1189
        %1400 = vmatprep.subr.bf16.mxu0 %v1192
        %1401 = vmatpush1.bf16.msra.mxu0 %v1191
        %1402 = vmatprep.subr.bf16.mxu0 %v1194
        %1403 = vmatpush1.bf16.msra.mxu0 %v1193
        %1404 = vmatprep.subr.bf16.mxu0 %v1196
        %1405 = vmatpush1.bf16.msra.mxu0 %v1195
        %1406 = vmatprep.subr.bf16.mxu0 %v1198
        %1407 = vmatpush1.bf16.msra.mxu0 %v1197
        %1408 = vmatprep.subr.bf16.mxu0 %v1200
        %1409 = vmatpush1.bf16.msra.mxu0 %v1199
        %1410 = vmatprep.subr.bf16.mxu0 %v1202
        %1411 = vmatpush1.bf16.msra.mxu0 %v1201
        %1412 = vmatprep.subr.bf16.mxu0 %v1204
        %1413 = vmatpush1.bf16.msra.mxu0 %v1203
        %1414 = vmatprep.subr.bf16.mxu0 %v1206
        %1415 = vmatpush1.bf16.msra.mxu0 %v1205
        %1416 = vmatprep.subr.bf16.mxu0 %v1208
        %1417 = vmatpush1.bf16.msra.mxu0 %v1207
        %1418 = vmatprep.mubr.bf16.mxu0 %v848
        %1419 = vmatmul.mubr.bf16.gmra.mrb[0].mxu0 %v847
        %v1420 = vpop.f32.mrb[0].mxu0
        %v1421 = vadd.f32 %v1308, %v1420
        %v1422 = vpop.f32.mrb[0].mxu0
        %v1423 = vadd.f32 %v1310, %v1422
        %v1424 = vpop.f32.mrb[0].mxu0
        %v1425 = vadd.f32 %v1312, %v1424
        %v1426 = vpop.f32.mrb[0].mxu0
        %v1427 = vadd.f32 %v1314, %v1426
        %1428 = vmatprep.mubr.bf16.mxu0 %v852
        %1429 = vmatmul.mubr.bf16.gmra.mrb[0].mxu0 %v851
        %v1430 = vpop.f32.mrb[0].mxu0
        %v1431 = vadd.f32 %v1318, %v1430
        %v1432 = vpop.f32.mrb[0].mxu0
        %v1433 = vadd.f32 %v1320, %v1432
        %v1434 = vpop.f32.mrb[0].mxu0
        %v1435 = vadd.f32 %v1322, %v1434
        %v1436 = vpop.f32.mrb[0].mxu0
        %v1437 = vadd.f32 %v1324, %v1436
        %1438 = vmatprep.mubr.bf16.mxu0 %v856
        %1439 = vmatmul.mubr.bf16.gmra.mrb[0].mxu0 %v855
        %v1440 = vpop.f32.mrb[0].mxu0
        %v1441 = vadd.f32 %v1328, %v1440
        %v1442 = vpop.f32.mrb[0].mxu0
        %v1443 = vadd.f32 %v1330, %v1442
        %v1444 = vpop.f32.mrb[0].mxu0
        %v1445 = vadd.f32 %v1332, %v1444
        %v1446 = vpop.f32.mrb[0].mxu0
        %v1447 = vadd.f32 %v1334, %v1446
        %1448 = vmatprep.mubr.bf16.mxu0 %v860
        %1449 = vmatmul.mubr.bf16.gmra.mrb[0].mxu0 %v859
        %v1450 = vpop.f32.mrb[0].mxu0
        %v1451 = vadd.f32 %v1338, %v1450
        %v1452 = vpop.f32.mrb[0].mxu0
        %v1453 = vadd.f32 %v1340, %v1452
        %v1454 = vpop.f32.mrb[0].mxu0
        %v1455 = vadd.f32 %v1342, %v1454
        %v1456 = vpop.f32.mrb[0].mxu0
        %v1457 = vadd.f32 %v1344, %v1456
        %1458 = vmatprep.mubr.bf16.mxu0 %v864
        %1459 = vmatmul.mubr.bf16.gmra.mrb[0].mxu0 %v863
        %v1460 = vpop.f32.mrb[0].mxu0
        %v1461 = vadd.f32 %v1348, %v1460
        %v1462 = vpop.f32.mrb[0].mxu0
        %v1463 = vadd.f32 %v1350, %v1462
        %v1464 = vpop.f32.mrb[0].mxu0
        %v1465 = vadd.f32 %v1352, %v1464
        %v1466 = vpop.f32.mrb[0].mxu0
        %v1467 = vadd.f32 %v1354, %v1466
        %1468 = vmatprep.mubr.bf16.mxu0 %v868
        %1469 = vmatmul.mubr.bf16.gmra.mrb[0].mxu0 %v867
        %v1470 = vpop.f32.mrb[0].mxu0
        %v1471 = vadd.f32 %v1358, %v1470
        %v1472 = vpop.f32.mrb[0].mxu0
        %v1473 = vadd.f32 %v1360, %v1472
        %v1474 = vpop.f32.mrb[0].mxu0
        %v1475 = vadd.f32 %v1362, %v1474
        %v1476 = vpop.f32.mrb[0].mxu0
        %v1477 = vadd.f32 %v1364, %v1476
        %1478 = vmatprep.mubr.bf16.mxu0 %v872
        %1479 = vmatmul.mubr.bf16.gmra.mrb[0].mxu0 %v871
        %v1480 = vpop.f32.mrb[0].mxu0
        %v1481 = vadd.f32 %v1368, %v1480
        %v1482 = vpop.f32.mrb[0].mxu0
        %v1483 = vadd.f32 %v1370, %v1482
        %v1484 = vpop.f32.mrb[0].mxu0
        %v1485 = vadd.f32 %v1372, %v1484
        %v1486 = vpop.f32.mrb[0].mxu0
        %v1487 = vadd.f32 %v1374, %v1486
        %1488 = vmatprep.mubr.bf16.mxu0 %v876
        %1489 = vmatmul.mubr.bf16.gmra.mrb[0].mxu0 %v875
        %v1490 = vpop.f32.mrb[0].mxu0
        %v1491 = vadd.f32 %v1378, %v1490
        %v1492 = vpop.f32.mrb[0].mxu0
        %v1493 = vadd.f32 %v1380, %v1492
        %v1494 = vpop.f32.mrb[0].mxu0
        %v1495 = vadd.f32 %v1382, %v1494
        %v1496 = vpop.f32.mrb[0].mxu0
        %v1497 = vadd.f32 %v1384, %v1496
        %1498 = vdwg.mxu0
        %v1499 = vmax.f32 %v1421, 0.0
        %v1500 = vmax.f32 %v1423, 0.0
        %v1501 = vmax.f32 %v1425, 0.0
        %v1502 = vmax.f32 %v1427, 0.0
        %v1503 = vmax.f32 %v1431, 0.0
        %v1504 = vmax.f32 %v1433, 0.0
        %v1505 = vmax.f32 %v1435, 0.0
        %v1506 = vmax.f32 %v1437, 0.0
        %v1507 = vmax.f32 %v1441, 0.0
        %v1508 = vmax.f32 %v1443, 0.0
        %v1509 = vmax.f32 %v1445, 0.0
        %v1510 = vmax.f32 %v1447, 0.0
        %v1511 = vmax.f32 %v1451, 0.0
        %v1512 = vmax.f32 %v1453, 0.0
        %v1513 = vmax.f32 %v1455, 0.0
        %v1514 = vmax.f32 %v1457, 0.0
        %v1515 = vmax.f32 %v1461, 0.0
        %v1516 = vmax.f32 %v1463, 0.0
        %v1517 = vmax.f32 %v1465, 0.0
        %v1518 = vmax.f32 %v1467, 0.0
        %v1519 = vmax.f32 %v1471, 0.0
        %v1520 = vmax.f32 %v1473, 0.0
        %v1521 = vmax.f32 %v1475, 0.0
        %v1522 = vmax.f32 %v1477, 0.0
        %v1523 = vmax.f32 %v1481, 0.0
        %v1524 = vmax.f32 %v1483, 0.0
        %v1525 = vmax.f32 %v1485, 0.0
        %v1526 = vmax.f32 %v1487, 0.0
        %v1527 = vmax.f32 %v1491, 0.0
        %v1528 = vmax.f32 %v1493, 0.0
        %v1529 = vmax.f32 %v1495, 0.0
        %v1530 = vmax.f32 %v1497, 0.0
        %v1531 = vpack.c.bf16 %v1501, %v1499
        %v1532 = vpack.c.bf16 %v1502, %v1500
        %v1533 = vpack.c.bf16 %v1505, %v1503
        %v1534 = vpack.c.bf16 %v1506, %v1504
        %v1535 = vpack.c.bf16 %v1509, %v1507
        %v1536 = vpack.c.bf16 %v1510, %v1508
        %v1537 = vpack.c.bf16 %v1513, %v1511
        %v1538 = vpack.c.bf16 %v1514, %v1512
        %v1539 = vpack.c.bf16 %v1517, %v1515
        %v1540 = vpack.c.bf16 %v1518, %v1516
        %v1541 = vpack.c.bf16 %v1521, %v1519
        %v1542 = vpack.c.bf16 %v1522, %v1520
        %v1543 = vpack.c.bf16 %v1525, %v1523
        %v1544 = vpack.c.bf16 %v1526, %v1524
        %v1545 = vpack.c.bf16 %v1529, %v1527
        %v1546 = vpack.c.bf16 %v1530, %v1528
        %v1547 = vld [vmem:[%s5] sm:$0xf]
        %v1548 = vld [vmem:[%s5 + $0x4] sm:$0xf]
        %v1549 = vld [vmem:[%s5 + $0x8] sm:$0xf]
        %v1550 = vld [vmem:[%s5 + $0xc] sm:$0xf]
        %v1551 = vld [vmem:[%s5 + $0x10] sm:$0xf]
        %v1552 = vld [vmem:[%s5 + $0x14] sm:$0xf]
        %v1553 = vld [vmem:[%s5 + $0x18] sm:$0xf]
        %v1554 = vld [vmem:[%s5 + $0x1c] sm:$0xf]
        %v1555 = vld [vmem:[%s5 + $0x20] sm:$0xf]
        %v1556 = vld [vmem:[%s5 + $0x24] sm:$0xf]
        %v1557 = vld [vmem:[%s5 + $0x28] sm:$0xf]
        %v1558 = vld [vmem:[%s5 + $0x2c] sm:$0xf]
        %v1559 = vld [vmem:[%s5 + $0x30] sm:$0xf]
        %v1560 = vld [vmem:[%s5 + $0x34] sm:$0xf]
        %v1561 = vld [vmem:[%s5 + $0x38] sm:$0xf]
        %v1562 = vld [vmem:[%s5 + $0x3c] sm:$0xf]
        %v1563 = vld [vmem:[%s5 + $0x40] sm:$0xf]
        %v1564 = vld [vmem:[%s5 + $0x44] sm:$0xf]
        %v1565 = vld [vmem:[%s5 + $0x48] sm:$0xf]
        %v1566 = vld [vmem:[%s5 + $0x4c] sm:$0xf]
        %v1567 = vld [vmem:[%s5 + $0x50] sm:$0xf]
        %v1568 = vld [vmem:[%s5 + $0x54] sm:$0xf]
        %v1569 = vld [vmem:[%s5 + $0x58] sm:$0xf]
        %v1570 = vld [vmem:[%s5 + $0x5c] sm:$0xf]
        %v1571 = vld [vmem:[%s5 + $0x60] sm:$0xf]
        %v1572 = vld [vmem:[%s5 + $0x64] sm:$0xf]
        %v1573 = vld [vmem:[%s5 + $0x68] sm:$0xf]
        %v1574 = vld [vmem:[%s5 + $0x6c] sm:$0xf]
        %v1575 = vld [vmem:[%s5 + $0x70] sm:$0xf]
        %v1576 = vld [vmem:[%s5 + $0x74] sm:$0xf]
        %v1577 = vld [vmem:[%s5 + $0x78] sm:$0xf]
        %v1578 = vld [vmem:[%s5 + $0x7c] sm:$0xf]
        %v1579 = vld [vmem:[%s6] sm:$0x1]
        %v1581 = vlaneseq
        %v1582 = vshrl.u32 %v1581, 7
        %v1583 = vsub.s32 0, %v1582
        %v1584 = vrot.slane %v1579, %v1583
        %v1618 = vunpack.c.l.b16 %v1547
        %v1619 = vunpack.c.l.b16 %v1548
        %v1620 = vunpack.c.l.b16 %v1549
        %v1621 = vunpack.c.l.b16 %v1550
        %v1622 = vunpack.c.l.b16 %v1551
        %v1623 = vunpack.c.l.b16 %v1552
        %v1624 = vunpack.c.l.b16 %v1553
        %v1625 = vunpack.c.l.b16 %v1554
        %v1626 = vunpack.c.l.b16 %v1555
        %v1627 = vunpack.c.l.b16 %v1556
        %v1628 = vunpack.c.l.b16 %v1557
        %v1629 = vunpack.c.l.b16 %v1558
        %v1630 = vunpack.c.l.b16 %v1559
        %v1631 = vunpack.c.l.b16 %v1560
        %v1632 = vunpack.c.l.b16 %v1561
        %v1633 = vunpack.c.l.b16 %v1562
        %v1634 = vunpack.c.l.b16 %v1563
        %v1635 = vunpack.c.l.b16 %v1564
        %v1636 = vunpack.c.l.b16 %v1565
        %v1637 = vunpack.c.l.b16 %v1566
        %v1638 = vunpack.c.l.b16 %v1567
        %v1639 = vunpack.c.l.b16 %v1568
        %v1640 = vunpack.c.l.b16 %v1569
        %v1641 = vunpack.c.l.b16 %v1570
        %v1642 = vunpack.c.l.b16 %v1571
        %v1643 = vunpack.c.l.b16 %v1572
        %v1644 = vunpack.c.l.b16 %v1573
        %v1645 = vunpack.c.l.b16 %v1574
        %v1646 = vunpack.c.l.b16 %v1575
        %v1647 = vunpack.c.l.b16 %v1576
        %v1648 = vunpack.c.l.b16 %v1577
        %v1649 = vunpack.c.l.b16 %v1578
        %v1650 = vpack.c.b16 %v1619, %v1618
        %v1651 = vpack.c.b16 %v1621, %v1620
        %v1652 = vpack.c.b16 %v1623, %v1622
        %v1653 = vpack.c.b16 %v1625, %v1624
        %v1654 = vpack.c.b16 %v1627, %v1626
        %v1655 = vpack.c.b16 %v1629, %v1628
        %v1656 = vpack.c.b16 %v1631, %v1630
        %v1657 = vpack.c.b16 %v1633, %v1632
        %v1658 = vpack.c.b16 %v1635, %v1634
        %v1659 = vpack.c.b16 %v1637, %v1636
        %v1660 = vpack.c.b16 %v1639, %v1638
        %v1661 = vpack.c.b16 %v1641, %v1640
        %v1662 = vpack.c.b16 %v1643, %v1642
        %v1663 = vpack.c.b16 %v1645, %v1644
        %v1664 = vpack.c.b16 %v1647, %v1646
        %v1665 = vpack.c.b16 %v1649, %v1648
        %1682 = vmatprep.subr.bf16.mxu0 0
        %1683 = vmatpush1.bf16.msra.mxu0 %v1650
        %1684 = vmatprep.subr.bf16.mxu0 0
        %1685 = vmatpush1.bf16.msra.mxu0 %v1651
        %1686 = vmatprep.subr.bf16.mxu0 0
        %1687 = vmatpush1.bf16.msra.mxu0 %v1652
        %1688 = vmatprep.subr.bf16.mxu0 0
        %1689 = vmatpush1.bf16.msra.mxu0 %v1653
        %1690 = vmatprep.subr.bf16.mxu0 0
        %1691 = vmatpush1.bf16.msra.mxu0 %v1654
        %1692 = vmatprep.subr.bf16.mxu0 0
        %1693 = vmatpush1.bf16.msra.mxu0 %v1655
        %1694 = vmatprep.subr.bf16.mxu0 0
        %1695 = vmatpush1.bf16.msra.mxu0 %v1656
        %1696 = vmatprep.subr.bf16.mxu0 0
        %1697 = vmatpush1.bf16.msra.mxu0 %v1657
        %1698 = vmatprep.subr.bf16.mxu0 0
        %1699 = vmatpush1.bf16.msra.mxu0 %v1658
        %1700 = vmatprep.subr.bf16.mxu0 0
        %1701 = vmatpush1.bf16.msra.mxu0 %v1659
        %1702 = vmatprep.subr.bf16.mxu0 0
        %1703 = vmatpush1.bf16.msra.mxu0 %v1660
        %1704 = vmatprep.subr.bf16.mxu0 0
        %1705 = vmatpush1.bf16.msra.mxu0 %v1661
        %1706 = vmatprep.subr.bf16.mxu0 0
        %1707 = vmatpush1.bf16.msra.mxu0 %v1662
        %1708 = vmatprep.subr.bf16.mxu0 0
        %1709 = vmatpush1.bf16.msra.mxu0 %v1663
        %1710 = vmatprep.subr.bf16.mxu0 0
        %1711 = vmatpush1.bf16.msra.mxu0 %v1664
        %1712 = vmatprep.subr.bf16.mxu0 0
        %1713 = vmatpush1.bf16.msra.mxu0 %v1665
        %1714 = vmatprep.mubr.bf16.mxu0 %v1532
        %1715 = vmatmul.mubr.bf16.gmra.mrb[0].mxu0 %v1531
        %v1716 = vpop.f32.mrb[0].mxu0
        %v1717 = vadd.f32 %v1584, %v1716
        %v1718 = vpop.f32.mrb[0].mxu0
        %v1719 = vpop.f32.mrb[0].mxu0
        %v1720 = vadd.f32 %v1584, %v1719
        %v1721 = vpop.f32.mrb[0].mxu0
        %1722 = vmatprep.mubr.bf16.mxu0 %v1534
        %1723 = vmatmul.mubr.bf16.gmra.mrb[0].mxu0 %v1533
        %v1724 = vpop.f32.mrb[0].mxu0
        %v1725 = vadd.f32 %v1584, %v1724
        %v1726 = vpop.f32.mrb[0].mxu0
        %v1727 = vpop.f32.mrb[0].mxu0
        %v1728 = vadd.f32 %v1584, %v1727
        %v1729 = vpop.f32.mrb[0].mxu0
        %1730 = vmatprep.mubr.bf16.mxu0 %v1536
        %1731 = vmatmul.mubr.bf16.gmra.mrb[0].mxu0 %v1535
        %v1732 = vpop.f32.mrb[0].mxu0
        %v1733 = vadd.f32 %v1584, %v1732
        %v1734 = vpop.f32.mrb[0].mxu0
        %v1735 = vpop.f32.mrb[0].mxu0
        %v1736 = vadd.f32 %v1584, %v1735
        %v1737 = vpop.f32.mrb[0].mxu0
        %1738 = vmatprep.mubr.bf16.mxu0 %v1538
        %1739 = vmatmul.mubr.bf16.gmra.mrb[0].mxu0 %v1537
        %v1740 = vpop.f32.mrb[0].mxu0
        %v1741 = vadd.f32 %v1584, %v1740
        %v1742 = vpop.f32.mrb[0].mxu0
        %v1743 = vpop.f32.mrb[0].mxu0
        %v1744 = vadd.f32 %v1584, %v1743
        %v1745 = vpop.f32.mrb[0].mxu0
        %1746 = vmatprep.mubr.bf16.mxu0 %v1540
        %1747 = vmatmul.mubr.bf16.gmra.mrb[0].mxu0 %v1539
        %v1748 = vpop.f32.mrb[0].mxu0
        %v1749 = vadd.f32 %v1584, %v1748
        %v1750 = vpop.f32.mrb[0].mxu0
        %v1751 = vpop.f32.mrb[0].mxu0
        %v1752 = vadd.f32 %v1584, %v1751
        %v1753 = vpop.f32.mrb[0].mxu0
        %1754 = vmatprep.mubr.bf16.mxu0 %v1542
        %1755 = vmatmul.mubr.bf16.gmra.mrb[0].mxu0 %v1541
        %v1756 = vpop.f32.mrb[0].mxu0
        %v1757 = vadd.f32 %v1584, %v1756
        %v1758 = vpop.f32.mrb[0].mxu0
        %v1759 = vpop.f32.mrb[0].mxu0
        %v1760 = vadd.f32 %v1584, %v1759
        %v1761 = vpop.f32.mrb[0].mxu0
        %1762 = vmatprep.mubr.bf16.mxu0 %v1544
        %1763 = vmatmul.mubr.bf16.gmra.mrb[0].mxu0 %v1543
        %v1764 = vpop.f32.mrb[0].mxu0
        %v1765 = vadd.f32 %v1584, %v1764
        %v1766 = vpop.f32.mrb[0].mxu0
        %v1767 = vpop.f32.mrb[0].mxu0
        %v1768 = vadd.f32 %v1584, %v1767
        %v1769 = vpop.f32.mrb[0].mxu0
        %1770 = vmatprep.mubr.bf16.mxu0 %v1546
        %1771 = vmatmul.mubr.bf16.gmra.mrb[0].mxu0 %v1545
        %v1772 = vpop.f32.mrb[0].mxu0
        %v1773 = vadd.f32 %v1584, %v1772
        %v1774 = vpop.f32.mrb[0].mxu0
        %v1775 = vpop.f32.mrb[0].mxu0
        %v1776 = vadd.f32 %v1584, %v1775
        %v1777 = vpop.f32.mrb[0].mxu0
        %1778 = vdwg.mxu0
        %v1779 = vmax.f32 %v1717, 0.0
        %v1780 = vmax.f32 %v1720, 0.0
        %v1781 = vmax.f32 %v1725, 0.0
        %v1782 = vmax.f32 %v1728, 0.0
        %v1783 = vmax.f32 %v1733, 0.0
        %v1784 = vmax.f32 %v1736, 0.0
        %v1785 = vmax.f32 %v1741, 0.0
        %v1786 = vmax.f32 %v1744, 0.0
        %v1787 = vmax.f32 %v1749, 0.0
        %v1788 = vmax.f32 %v1752, 0.0
        %v1789 = vmax.f32 %v1757, 0.0
        %v1790 = vmax.f32 %v1760, 0.0
        %v1791 = vmax.f32 %v1765, 0.0
        %v1792 = vmax.f32 %v1768, 0.0
        %v1793 = vmax.f32 %v1773, 0.0
        %v1794 = vmax.f32 %v1776, 0.0
        %v1795 = vpack.c.bf16 %v1780, %v1779
        %v1796 = vpack.c.bf16 %v1782, %v1781
        %v1797 = vpack.c.bf16 %v1784, %v1783
        %v1798 = vpack.c.bf16 %v1786, %v1785
        %v1799 = vpack.c.bf16 %v1788, %v1787
        %v1800 = vpack.c.bf16 %v1790, %v1789
        %v1801 = vpack.c.bf16 %v1792, %v1791
        %v1802 = vpack.c.bf16 %v1794, %v1793
        %v1803 = vld [vmem:[%s7] sm:$0xf]
        %v1804 = vld [vmem:[%s7 + $0x4] sm:$0xf]
        %v1805 = vld [vmem:[%s7 + $0x8] sm:$0xf]
        %v1806 = vld [vmem:[%s7 + $0xc] sm:$0xf]
        %v1807 = vld [vmem:[%s7 + $0x10] sm:$0xf]
        %v1808 = vld [vmem:[%s7 + $0x14] sm:$0xf]
        %v1809 = vld [vmem:[%s7 + $0x18] sm:$0xf]
        %v1810 = vld [vmem:[%s7 + $0x1c] sm:$0xf]
        %v1811 = vld [vmem:[%s7 + $0x20] sm:$0xf]
        %v1812 = vld [vmem:[%s7 + $0x24] sm:$0xf]
        %v1813 = vld [vmem:[%s7 + $0x28] sm:$0xf]
        %v1814 = vld [vmem:[%s7 + $0x2c] sm:$0xf]
        %v1815 = vld [vmem:[%s7 + $0x30] sm:$0xf]
        %v1816 = vld [vmem:[%s7 + $0x34] sm:$0xf]
        %v1817 = vld [vmem:[%s7 + $0x38] sm:$0xf]
        %v1818 = vld [vmem:[%s7 + $0x3c] sm:$0xf]
        %v1819 = vld [vmem:[%s8] sm:$0x1]
        %v1821 = vlaneseq
        %v1822 = vshrl.u32 %v1821, 7
        %v1823 = vsub.s32 0, %v1822
        %v1824 = vrot.slane %v1819, %v1823
        %v1842 = vunpack.c.l.b16 %v1803
        %v1843 = vunpack.c.l.b16 %v1804
        %v1844 = vunpack.c.l.b16 %v1805
        %v1845 = vunpack.c.l.b16 %v1806
        %v1846 = vunpack.c.l.b16 %v1807
        %v1847 = vunpack.c.l.b16 %v1808
        %v1848 = vunpack.c.l.b16 %v1809
        %v1849 = vunpack.c.l.b16 %v1810
        %v1850 = vunpack.c.l.b16 %v1811
        %v1851 = vunpack.c.l.b16 %v1812
        %v1852 = vunpack.c.l.b16 %v1813
        %v1853 = vunpack.c.l.b16 %v1814
        %v1854 = vunpack.c.l.b16 %v1815
        %v1855 = vunpack.c.l.b16 %v1816
        %v1856 = vunpack.c.l.b16 %v1817
        %v1857 = vunpack.c.l.b16 %v1818
        %v1858 = vpack.c.b16 %v1843, %v1842
        %v1859 = vpack.c.b16 %v1845, %v1844
        %v1860 = vpack.c.b16 %v1847, %v1846
        %v1861 = vpack.c.b16 %v1849, %v1848
        %v1862 = vpack.c.b16 %v1851, %v1850
        %v1863 = vpack.c.b16 %v1853, %v1852
        %v1864 = vpack.c.b16 %v1855, %v1854
        %v1865 = vpack.c.b16 %v1857, %v1856
        %1874 = vmatprep.subr.bf16.mxu0 0
        %1875 = vmatpush1.bf16.msra.mxu0 %v1858
        %1876 = vmatprep.subr.bf16.mxu0 0
        %1877 = vmatpush1.bf16.msra.mxu0 %v1859
        %1878 = vmatprep.subr.bf16.mxu0 0
        %1879 = vmatpush1.bf16.msra.mxu0 %v1860
        %1880 = vmatprep.subr.bf16.mxu0 0
        %1881 = vmatpush1.bf16.msra.mxu0 %v1861
        %1882 = vmatprep.subr.bf16.mxu0 0
        %1883 = vmatpush1.bf16.msra.mxu0 %v1862
        %1884 = vmatprep.subr.bf16.mxu0 0
        %1885 = vmatpush1.bf16.msra.mxu0 %v1863
        %1886 = vmatprep.subr.bf16.mxu0 0
        %1887 = vmatpush1.bf16.msra.mxu0 %v1864
        %1888 = vmatprep.subr.bf16.mxu0 0
        %1889 = vmatpush1.bf16.msra.mxu0 %v1865
        %1890 = vmatprep.subr.bf16.mxu0 0
        %1891 = vmatpush1.bf16.msra.mxu0 0
        %1892 = vmatprep.subr.bf16.mxu0 0
        %1893 = vmatpush1.bf16.msra.mxu0 0
        %1894 = vmatprep.subr.bf16.mxu0 0
        %1895 = vmatpush1.bf16.msra.mxu0 0
        %1896 = vmatprep.subr.bf16.mxu0 0
        %1897 = vmatpush1.bf16.msra.mxu0 0
        %1898 = vmatprep.subr.bf16.mxu0 0
        %1899 = vmatpush1.bf16.msra.mxu0 0
        %1900 = vmatprep.subr.bf16.mxu0 0
        %1901 = vmatpush1.bf16.msra.mxu0 0
        %1902 = vmatprep.subr.bf16.mxu0 0
        %1903 = vmatpush1.bf16.msra.mxu0 0
        %1904 = vmatprep.subr.bf16.mxu0 0
        %1905 = vmatpush1.bf16.msra.mxu0 0
        %1906 = vmatprep.mubr.bf16.mxu0 0
        %1907 = vmatmul.mubr.bf16.gmra.mrb[0].mxu0 %v1795
        %v1908 = vpop.f32.mrb[0].mxu0
        %v1909 = vadd.f32 %v1824, %v1908
        %v1910 = vpop.f32.mrb[0].mxu0
        %v1911 = vpop.f32.mrb[0].mxu0
        %v1912 = vadd.f32 %v1824, %v1911
        %v1913 = vpop.f32.mrb[0].mxu0
        %1914 = vmatprep.mubr.bf16.mxu0 0
        %1915 = vmatmul.mubr.bf16.gmra.mrb[0].mxu0 %v1796
        %v1916 = vpop.f32.mrb[0].mxu0
        %v1917 = vadd.f32 %v1824, %v1916
        %v1918 = vpop.f32.mrb[0].mxu0
        %v1919 = vpop.f32.mrb[0].mxu0
        %v1920 = vadd.f32 %v1824, %v1919
        %v1921 = vpop.f32.mrb[0].mxu0
        %1922 = vmatprep.mubr.bf16.mxu0 0
        %1923 = vmatmul.mubr.bf16.gmra.mrb[0].mxu0 %v1797
        %v1924 = vpop.f32.mrb[0].mxu0
        %v1925 = vadd.f32 %v1824, %v1924
        %v1926 = vpop.f32.mrb[0].mxu0
        %v1927 = vpop.f32.mrb[0].mxu0
        %v1928 = vadd.f32 %v1824, %v1927
        %v1929 = vpop.f32.mrb[0].mxu0
        %1930 = vmatprep.mubr.bf16.mxu0 0
        %1931 = vmatmul.mubr.bf16.gmra.mrb[0].mxu0 %v1798
        %v1932 = vpop.f32.mrb[0].mxu0
        %v1933 = vadd.f32 %v1824, %v1932
        %v1934 = vpop.f32.mrb[0].mxu0
        %v1935 = vpop.f32.mrb[0].mxu0
        %v1936 = vadd.f32 %v1824, %v1935
        %v1937 = vpop.f32.mrb[0].mxu0
        %1938 = vmatprep.mubr.bf16.mxu0 0
        %1939 = vmatmul.mubr.bf16.gmra.mrb[0].mxu0 %v1799
        %v1940 = vpop.f32.mrb[0].mxu0
        %v1941 = vadd.f32 %v1824, %v1940
        %v1942 = vpop.f32.mrb[0].mxu0
        %v1943 = vpop.f32.mrb[0].mxu0
        %v1944 = vadd.f32 %v1824, %v1943
        %v1945 = vpop.f32.mrb[0].mxu0
        %1946 = vmatprep.mubr.bf16.mxu0 0
        %1947 = vmatmul.mubr.bf16.gmra.mrb[0].mxu0 %v1800
        %v1948 = vpop.f32.mrb[0].mxu0
        %v1949 = vadd.f32 %v1824, %v1948
        %v1950 = vpop.f32.mrb[0].mxu0
        %v1951 = vpop.f32.mrb[0].mxu0
        %v1952 = vadd.f32 %v1824, %v1951
        %v1953 = vpop.f32.mrb[0].mxu0
        %1954 = vmatprep.mubr.bf16.mxu0 0
        %1955 = vmatmul.mubr.bf16.gmra.mrb[0].mxu0 %v1801
        %v1956 = vpop.f32.mrb[0].mxu0
        %v1957 = vadd.f32 %v1824, %v1956
        %v1958 = vpop.f32.mrb[0].mxu0
        %v1959 = vpop.f32.mrb[0].mxu0
        %v1960 = vadd.f32 %v1824, %v1959
        %v1961 = vpop.f32.mrb[0].mxu0
        %1962 = vmatprep.mubr.bf16.mxu0 0
        %1963 = vmatmul.mubr.bf16.gmra.mrb[0].mxu0 %v1802
        %v1964 = vpop.f32.mrb[0].mxu0
        %v1965 = vadd.f32 %v1824, %v1964
        %v1966 = vpop.f32.mrb[0].mxu0
        %v1967 = vpop.f32.mrb[0].mxu0
        %v1968 = vadd.f32 %v1824, %v1967
        %v1969 = vpop.f32.mrb[0].mxu0
        %1970 = vdwg.mxu0
        %v1971 = vmax.f32 %v1909, 0.0
        %v1972 = vmax.f32 %v1912, 0.0
        %v1973 = vmax.f32 %v1917, 0.0
        %v1974 = vmax.f32 %v1920, 0.0
        %v1975 = vmax.f32 %v1925, 0.0
        %v1976 = vmax.f32 %v1928, 0.0
        %v1977 = vmax.f32 %v1933, 0.0
        %v1978 = vmax.f32 %v1936, 0.0
        %v1979 = vmax.f32 %v1941, 0.0
        %v1980 = vmax.f32 %v1944, 0.0
        %v1981 = vmax.f32 %v1949, 0.0
        %v1982 = vmax.f32 %v1952, 0.0
        %v1983 = vmax.f32 %v1957, 0.0
        %v1984 = vmax.f32 %v1960, 0.0
        %v1985 = vmax.f32 %v1965, 0.0
        %v1986 = vmax.f32 %v1968, 0.0
        %v1987 = vpack.c.bf16 %v1972, %v1971
        %v1988 = vpack.c.bf16 %v1974, %v1973
        %v1989 = vpack.c.bf16 %v1976, %v1975
        %v1990 = vpack.c.bf16 %v1978, %v1977
        %v1991 = vpack.c.bf16 %v1980, %v1979
        %v1992 = vpack.c.bf16 %v1982, %v1981
        %v1993 = vpack.c.bf16 %v1984, %v1983
        %v1994 = vpack.c.bf16 %v1986, %v1985
        %v1995 = vld [vmem:[%s9] sm:$0xf]
        %v1996 = vld [vmem:[%s9 + $0x4] sm:$0xf]
        %v1997 = vld [vmem:[%s9 + $0x8] sm:$0xf]
        %v1998 = vld [vmem:[%s9 + $0xc] sm:$0xf]
        %v1999 = vld [vmem:[%s9 + $0x10] sm:$0xf]
        %v2000 = vld [vmem:[%s9 + $0x14] sm:$0xf]
        %v2001 = vld [vmem:[%s9 + $0x18] sm:$0xf]
        %v2002 = vld [vmem:[%s9 + $0x1c] sm:$0xf]
        %v2003 = vld [vmem:[%s10] sm:$0x1]
        %v2005 = vlaneseq
        %v2006 = vshrl.u32 %v2005, 7
        %v2007 = vsub.s32 0, %v2006
        %v2008 = vrot.slane %v2003, %v2007
        %v2018 = vunpack.c.l.b16 %v1995
        %v2019 = vunpack.c.l.b16 %v1996
        %v2020 = vunpack.c.l.b16 %v1997
        %v2021 = vunpack.c.l.b16 %v1998
        %v2022 = vunpack.c.l.b16 %v1999
        %v2023 = vunpack.c.l.b16 %v2000
        %v2024 = vunpack.c.l.b16 %v2001
        %v2025 = vunpack.c.l.b16 %v2002
        %v2026 = vpack.c.b16 %v2019, %v2018
        %v2027 = vpack.c.b16 %v2021, %v2020
        %v2028 = vpack.c.b16 %v2023, %v2022
        %v2029 = vpack.c.b16 %v2025, %v2024
        %vm2034 = vcmask 523264
        %v2036 = vsel %vm2034, %v1987, 0
        %v2039 = vsel %vm2034, %v1988, 0
        %v2042 = vsel %vm2034, %v1989, 0
        %v2045 = vsel %vm2034, %v1990, 0
        %v2048 = vsel %vm2034, %v1991, 0
        %v2051 = vsel %vm2034, %v1992, 0
        %v2054 = vsel %vm2034, %v1993, 0
        %v2057 = vsel %vm2034, %v1994, 0
        %2059 = vmatprep.subr.bf16.mxu0 0
        %2060 = vmatpush1.bf16.msra.mxu0 %v2026
        %2061 = vmatprep.subr.bf16.mxu0 0
        %2062 = vmatpush1.bf16.msra.mxu0 %v2027
        %2063 = vmatprep.subr.bf16.mxu0 0
        %2064 = vmatpush1.bf16.msra.mxu0 %v2028
        %2065 = vmatprep.subr.bf16.mxu0 0
        %2066 = vmatpush1.bf16.msra.mxu0 %v2029
        %2067 = vmatprep.subr.bf16.mxu0 0
        %2068 = vmatpush1.bf16.msra.mxu0 0
        %2069 = vmatprep.subr.bf16.mxu0 0
        %2070 = vmatpush1.bf16.msra.mxu0 0
        %2071 = vmatprep.subr.bf16.mxu0 0
        %2072 = vmatpush1.bf16.msra.mxu0 0
        %2073 = vmatprep.subr.bf16.mxu0 0
        %2074 = vmatpush1.bf16.msra.mxu0 0
        %2075 = vmatprep.subr.bf16.mxu0 0
        %2076 = vmatpush1.bf16.msra.mxu0 0
        %2077 = vmatprep.subr.bf16.mxu0 0
        %2078 = vmatpush1.bf16.msra.mxu0 0
        %2079 = vmatprep.subr.bf16.mxu0 0
        %2080 = vmatpush1.bf16.msra.mxu0 0
        %2081 = vmatprep.subr.bf16.mxu0 0
        %2082 = vmatpush1.bf16.msra.mxu0 0
        %2083 = vmatprep.subr.bf16.mxu0 0
        %2084 = vmatpush1.bf16.msra.mxu0 0
        %2085 = vmatprep.subr.bf16.mxu0 0
        %2086 = vmatpush1.bf16.msra.mxu0 0
        %2087 = vmatprep.subr.bf16.mxu0 0
        %2088 = vmatpush1.bf16.msra.mxu0 0
        %2089 = vmatprep.subr.bf16.mxu0 0
        %2090 = vmatpush1.bf16.msra.mxu0 0
        %2091 = vmatprep.mubr.bf16.mxu0 0
        %2092 = vmatmul.mubr.bf16.gmra.mrb[0].mxu0 %v2036
        %v2093 = vpop.f32.mrb[0].mxu0
        %v2094 = vadd.f32 %v2008, %v2093
        %v2095 = vpop.f32.mrb[0].mxu0
        %v2096 = vpop.f32.mrb[0].mxu0
        %v2097 = vadd.f32 %v2008, %v2096
        %v2098 = vpop.f32.mrb[0].mxu0
        %2099 = vmatprep.mubr.bf16.mxu0 0
        %2100 = vmatmul.mubr.bf16.gmra.mrb[0].mxu0 %v2039
        %v2101 = vpop.f32.mrb[0].mxu0
        %v2102 = vadd.f32 %v2008, %v2101
        %v2103 = vpop.f32.mrb[0].mxu0
        %v2104 = vpop.f32.mrb[0].mxu0
        %v2105 = vadd.f32 %v2008, %v2104
        %v2106 = vpop.f32.mrb[0].mxu0
        %2107 = vmatprep.mubr.bf16.mxu0 0
        %2108 = vmatmul.mubr.bf16.gmra.mrb[0].mxu0 %v2042
        %v2109 = vpop.f32.mrb[0].mxu0
        %v2110 = vadd.f32 %v2008, %v2109
        %v2111 = vpop.f32.mrb[0].mxu0
        %v2112 = vpop.f32.mrb[0].mxu0
        %v2113 = vadd.f32 %v2008, %v2112
        %v2114 = vpop.f32.mrb[0].mxu0
        %2115 = vmatprep.mubr.bf16.mxu0 0
        %2116 = vmatmul.mubr.bf16.gmra.mrb[0].mxu0 %v2045
        %v2117 = vpop.f32.mrb[0].mxu0
        %v2118 = vadd.f32 %v2008, %v2117
        %v2119 = vpop.f32.mrb[0].mxu0
        %v2120 = vpop.f32.mrb[0].mxu0
        %v2121 = vadd.f32 %v2008, %v2120
        %v2122 = vpop.f32.mrb[0].mxu0
        %2123 = vmatprep.mubr.bf16.mxu0 0
        %2124 = vmatmul.mubr.bf16.gmra.mrb[0].mxu0 %v2048
        %v2125 = vpop.f32.mrb[0].mxu0
        %v2126 = vadd.f32 %v2008, %v2125
        %v2127 = vpop.f32.mrb[0].mxu0
        %v2128 = vpop.f32.mrb[0].mxu0
        %v2129 = vadd.f32 %v2008, %v2128
        %v2130 = vpop.f32.mrb[0].mxu0
        %2131 = vmatprep.mubr.bf16.mxu0 0
        %2132 = vmatmul.mubr.bf16.gmra.mrb[0].mxu0 %v2051
        %v2133 = vpop.f32.mrb[0].mxu0
        %v2134 = vadd.f32 %v2008, %v2133
        %v2135 = vpop.f32.mrb[0].mxu0
        %v2136 = vpop.f32.mrb[0].mxu0
        %v2137 = vadd.f32 %v2008, %v2136
        %v2138 = vpop.f32.mrb[0].mxu0
        %2139 = vmatprep.mubr.bf16.mxu0 0
        %2140 = vmatmul.mubr.bf16.gmra.mrb[0].mxu0 %v2054
        %v2141 = vpop.f32.mrb[0].mxu0
        %v2142 = vadd.f32 %v2008, %v2141
        %v2143 = vpop.f32.mrb[0].mxu0
        %v2144 = vpop.f32.mrb[0].mxu0
        %v2145 = vadd.f32 %v2008, %v2144
        %v2146 = vpop.f32.mrb[0].mxu0
        %2147 = vmatprep.mubr.bf16.mxu0 0
        %2148 = vmatmul.mubr.bf16.gmra.mrb[0].mxu0 %v2057
        %v2149 = vpop.f32.mrb[0].mxu0
        %v2150 = vadd.f32 %v2008, %v2149
        %v2151 = vpop.f32.mrb[0].mxu0
        %v2152 = vpop.f32.mrb[0].mxu0
        %v2153 = vadd.f32 %v2008, %v2152
        %v2154 = vpop.f32.mrb[0].mxu0
        %2155 = vdwg.mxu0
        %2156 = vst [vmem:[%s395] sm:$0xff] %v2094
        %2157 = vst [vmem:[%s395 + $0x8] sm:$0xff] %v2097
        %2158 = vst [vmem:[%s395 + $0x10] sm:$0xff] %v2102
        %2159 = vst [vmem:[%s395 + $0x18] sm:$0xff] %v2105
        %2160 = vst [vmem:[%s395 + $0x20] sm:$0xff] %v2110
        %2161 = vst [vmem:[%s395 + $0x28] sm:$0xff] %v2113
        %2162 = vst [vmem:[%s395 + $0x30] sm:$0xff] %v2118
        %2163 = vst [vmem:[%s395 + $0x38] sm:$0xff] %v2121
        %2164 = vst [vmem:[%s395 + $0x40] sm:$0xff] %v2126
        %2165 = vst [vmem:[%s395 + $0x48] sm:$0xff] %v2129
        %2166 = vst [vmem:[%s395 + $0x50] sm:$0xff] %v2134
        %2167 = vst [vmem:[%s395 + $0x58] sm:$0xff] %v2137
        %2168 = vst [vmem:[%s395 + $0x60] sm:$0xff] %v2142
        %2169 = vst [vmem:[%s395 + $0x68] sm:$0xff] %v2145
        %2170 = vst [vmem:[%s395 + $0x70] sm:$0xff] %v2150
        %2171 = vst [vmem:[%s395 + $0x78] sm:$0xff] %v2153
        %s2172 = sand.u32 %s270, 1
        %s2173 = scalar_lea.sflag [#allocation4], %s2172
        %s2174 = sand.u32 %s270, 1
        %s2175 = smul.addr %s2174, 128
        %s2176 = scalar_lea.vmem [#allocation5], %s2175
        // Predicated region
        $region69: #{tpu_custom_call.1} parent=63 // pred_check
          %p2177 = pneg %p280
        $region70: #{tpu_custom_call.1} parent=63 // pred_check_branch
          %2179 = sbr.rel (%p2177) target = $region72
        $region71: #{tpu_custom_call.1} parent=63 // pred_region
          %s2180 = smul.u32 16, %s26
          %s2182 = ssub.s32 2048, 2048
          %2183 = vsyncadd %s2173, %s2182
          %s2184 = smul.addr %s2180, 128
          %s2185 = scalar_lea.hbm %s11, %s2184
          %s2186 = sshll.u32 %s2176, 4
          %s2187 = int_to_ptr.vmem [resolvable:$true] %s2186
          %2192 = dma.vmem_to_hbm [thread:$0]  %s2187, 2048, %s2185, %s2173, 128, 128, 8
        $region72: #{tpu_custom_call.1} parent=63 // pred_fallthru
          _
      $region64: #{tpu_custom_call.1} parent=5 // pred_fallthru
        _
      %p2193 = scmp.le.s32.totalorder 2, %s21
      // Predicated region
      $region73: #{tpu_custom_call.1} parent=5 // pred_check
        %p2194 = pneg %p2193
      $region74: #{tpu_custom_call.1} parent=5 // pred_check_branch
        %2196 = sbr.rel (%p2194) target = $region76
      $region75: #{tpu_custom_call.1} parent=5 // pred_region
        %s2197 = ssub.s32 %s21, 2
        // Predicated region
        $region77: #{tpu_custom_call.1} parent=75 // pred_check
          %p2198 = pneg %p286
        $region78: #{tpu_custom_call.1} parent=75 // pred_check_branch
          %2200 = sbr.rel (%p2198) target = $region80
        $region79: #{tpu_custom_call.1} parent=75 // pred_region
          %s2201 = sand.u32 %s271, 1
          %s2202 = scalar_lea.sflag [#allocation4], %s2201
          %s2203 = sand.u32 %s271, 1
          %s2204 = smul.addr %s2203, 128
          %s2205 = scalar_lea.vmem [#allocation5], %s2204
          %2206 = dma.done %s2202, 2048
        $region80: #{tpu_custom_call.1} parent=75 // pred_fallthru
          _
      $region76: #{tpu_custom_call.1} parent=5 // pred_fallthru
        _
    $region6: #{tpu_custom_call.1} parent=1 // loop_footer
      %s25 = sadd.s32 1, %s21
    $region7: #{tpu_custom_call.1} parent=1 // loop_footer_branch
      %20 = sbr.rel target = $region3
    $region8: #{tpu_custom_call.1} parent=1 // loop_exit
      _
    %2207 = vsyncpa [#allocation3], 1
    %s2208 = scalar_lea.sflag [#allocation3], 1
    %2209 = vsyncpa %s2208, 1
    %2210 = vsyncpa [#allocation4], 1
    %s2211 = scalar_lea.sflag [#allocation4], 1
    %2212 = vsyncpa %s2211, 1

</llo_original>
